<compile_context>
chip_gen: v6e
topology: v6e:2x2x1
jax: 0.10.0
libtpu: 0.0.40
codegen_flags: <defaults>
</compile_context>

<pallas_src>
import math
from functools import partial

import jax
import jax.numpy as jnp
from jax.experimental import pallas as pl
from jax.experimental.pallas import tpu as pltpu


N_CLASS_PAD = 128     # lane-dense classifier output width (sliced in the wrapper)
FF_CHUNK_MAX = 512    # d_ff tile width for the MLP


# --------------------------------------------------------------------------
# In-kernel helpers
# --------------------------------------------------------------------------
def _layernorm(x, gamma, beta, eps=1e-5):
    mu = jnp.mean(x, axis=-1, keepdims=True)
    var = jnp.mean((x - mu) ** 2, axis=-1, keepdims=True)
    return (x - mu) * jax.lax.rsqrt(var + eps) * gamma + beta


# --------------------------------------------------------------------------
# Fused encoder kernel: one grid step == one transformer layer on one batch chunk
# (classifier head fused into the last layer step)
# --------------------------------------------------------------------------
def encoder_kernel(x_hbm, wqkv_ref, bqkv_ref, wo_ref, pvec_ref,
                   w1_ref, b1_ref, w2_ref,
                   lnf_ref, wfc_ref, bfc_ref,
                   out_ref, x_scr, a_scr, copy_sem,
                   *, n_heads, d_k, cb, seq, d_model, d_ff, ff_chunk):
    b = pl.program_id(0)          # batch chunk ("parallel" axis)
    l = pl.program_id(1)          # layer ("arbitrary" axis -> sequential carry)
    T, D = seq, d_model
    CBT = cb * T
    hdk = n_heads * d_k
    bf16, f32 = jnp.bfloat16, jnp.float32

    # DMA this chunk's activations straight from HBM into the persistent VMEM
    # scratch exactly once (input is memory_space=ANY -> no double-buffered window).
    @pl.when(l == 0)
    def _():
        row0 = b * CBT
        if CBT % 8 == 0:
            row0 = pl.multiple_of(row0, 8)
        cp = pltpu.make_async_copy(x_hbm.at[pl.ds(row0, CBT)], x_scr, copy_sem)
        cp.start()
        cp.wait()

    x = x_scr[...]                                               # (CBT, D) f32

    # ---- fused QKV projection: bf16 weights, f32 accumulate ----
    qkv = jnp.dot(x.astype(bf16), wqkv_ref[0],
                  preferred_element_type=f32) + bqkv_ref[0]      # (CBT, 3*hdk)

    # ---- multi-head attention ----
    scale = 1.0 / math.sqrt(d_k)
    for h in range(n_heads):                                     # static unroll
        qh = qkv[:, h * d_k:(h + 1) * d_k].reshape(cb, T, d_k).astype(bf16)
        kh = qkv[:, hdk + h * d_k: hdk + (h + 1) * d_k].reshape(cb, T, d_k).astype(bf16)
        vh = qkv[:, 2 * hdk + h * d_k: 2 * hdk + (h + 1) * d_k].reshape(cb, T, d_k).astype(bf16)
        s = jnp.einsum('btd,bsd->bts', qh, kh,
                       preferred_element_type=f32) * scale       # (cb,T,T) f32
        s = s - jnp.max(s, axis=-1, keepdims=True)
        p = jnp.exp(s)
        p = p * pl.reciprocal(jnp.sum(p, axis=-1, keepdims=True), approx=True)
        ah = jnp.einsum('bts,bsd->btd', p.astype(bf16), vh,
                        preferred_element_type=f32)              # (cb,T,d_k) f32
        a_scr[:, h * d_k:(h + 1) * d_k] = ah.reshape(CBT, d_k)

    # Single K=hdk output projection (full MXU occupancy) instead of per-head folds.
    attn = jnp.dot(a_scr[...].astype(bf16), wo_ref[0],
                   preferred_element_type=f32) + pvec_ref[0, 4:5, :]

    # ---- residual + LN1 (f32 elementwise) ----
    h1 = _layernorm(x + attn, pvec_ref[0, 0:1, :], pvec_ref[0, 1:2, :])

    # ---- MLP, tiled over d_ff; tanh-approx GELU (EUP) ----
    h1b = h1.astype(bf16)
    f2 = jnp.zeros((CBT, D), f32)
    for c in range(d_ff // ff_chunk):                            # static unroll
        lo, hi = c * ff_chunk, (c + 1) * ff_chunk
        f1c = jnp.dot(h1b, w1_ref[0, :, lo:hi],
                      preferred_element_type=f32) + b1_ref[0, :, lo:hi]
        gc = jax.nn.gelu(f1c, approximate=True)                  # tanh GELU
        f2 = f2 + jnp.dot(gc.astype(bf16), w2_ref[0, lo:hi, :],
                          preferred_element_type=f32)
    f2 = f2 + pvec_ref[0, 5:6, :]

    # ---- residual + LN2 (dropout = identity), carry to next layer ----
    x_new = _layernorm(h1 + f2, pvec_ref[0, 2:3, :], pvec_ref[0, 3:4, :])
    x_scr[...] = x_new

    # ---- classifier head fused into the final layer step ----
    @pl.when(l == pl.num_programs(1) - 1)
    def _():
        cls = x_new.reshape(cb, T, D)[:, 0, :]                   # CLS tokens (cb, D)
        cls = _layernorm(cls, lnf_ref[0:1, :], lnf_ref[1:2, :])
        out_ref[0] = jnp.dot(cls.astype(bf16), wfc_ref[...],
                             preferred_element_type=f32) + bfc_ref[...]


def _pick_vmem_limit():
    # Explicit scoped-VMEM budget: ~3/4 of physical (96 MiB v5e/v6e, 48 MiB v7x).
    cap = 128 * 1024 * 1024
    try:
        cap = getattr(pltpu.get_tpu_info(), 'vmem_capacity_bytes', cap)
    except Exception:
        pass
    return int(min(cap * 3 // 4, 100 * 1024 * 1024))


def encoder_pallas(x_emb, params, *, n_heads, d_k, n_classes):
    """x_emb: (B, T, D) post-embedding, post-positional-encoding activations (f32)."""
    B, T, D = x_emb.shape
    hdk = n_heads * d_k
    L = params['wqkv'].shape[0]
    d_ff = params['w1'].shape[-1]

    ff_chunk = min(d_ff, FF_CHUNK_MAX)
    if d_ff % ff_chunk != 0:
        ff_chunk = d_ff   # TODO(synk): ragged d_ff tiling

    # Megacore: split the batch across a leading "parallel" grid axis (2 TCs on v7x).
    n_chunks = 2 if (B >= 2 and B % 2 == 0) else 1
    cb = B // n_chunks

    x_flat = x_emb.reshape(B * T, D)

    in_specs = [
        pl.BlockSpec(memory_space=pl.ANY),                           # x (DMA'd once)
        pl.BlockSpec((1, D, 3 * hdk), lambda b, l: (l, 0, 0)),       # wqkv (bf16)
        pl.BlockSpec((1, 1, 3 * hdk), lambda b, l: (l, 0, 0)),       # bqkv (f32)
        pl.BlockSpec((1, hdk, D), lambda b, l: (l, 0, 0)),           # wo   (bf16)
        pl.BlockSpec((1, 6, D), lambda b, l: (l, 0, 0)),             # pvec: g1,b1,g2,b2,bo,b2
        pl.BlockSpec((1, D, d_ff), lambda b, l: (l, 0, 0)),          # w1   (bf16)
        pl.BlockSpec((1, 1, d_ff), lambda b, l: (l, 0, 0)),          # b1   (f32)
        pl.BlockSpec((1, d_ff, D), lambda b, l: (l, 0, 0)),          # w2   (bf16)
        pl.BlockSpec((2, D), lambda b, l: (0, 0)),                   # final LN (g, b)
        pl.BlockSpec((D, N_CLASS_PAD), lambda b, l: (0, 0)),         # fc weight (bf16, padded)
        pl.BlockSpec((1, N_CLASS_PAD), lambda b, l: (0, 0)),         # fc bias (padded)
    ]
    out_spec = pl.BlockSpec((1, cb, N_CLASS_PAD), lambda b, l: (b, 0, 0))

    out = pl.pallas_call(
        partial(encoder_kernel, n_heads=n_heads, d_k=d_k, cb=cb, seq=T,
                d_model=D, d_ff=d_ff, ff_chunk=ff_chunk),
        out_shape=jax.ShapeDtypeStruct((n_chunks, cb, N_CLASS_PAD), jnp.float32),
        grid_spec=pltpu.PrefetchScalarGridSpec(
            num_scalar_prefetch=0,
            grid=(n_chunks, L),
            in_specs=in_specs,
            out_specs=out_spec,
            scratch_shapes=[pltpu.VMEM((cb * T, D), jnp.float32),     # activation carry
                            pltpu.VMEM((cb * T, hdk), jnp.float32),   # attn head outputs
                            pltpu.SemaphoreType.DMA(())],
        ),
        compiler_params=pltpu.CompilerParams(
            dimension_semantics=("parallel", "arbitrary"),
            vmem_limit_bytes=_pick_vmem_limit()),
    )(x_flat, params['wqkv'], params['bqkv'], params['wo'], params['pvec'],
      params['w1'], params['b1'], params['w2'],
      params['lnf'], params['wfc'], params['bfc'])

    return out.reshape(B, N_CLASS_PAD)[:, :n_classes]


# --------------------------------------------------------------------------
# Parameter construction (shapes from the PyTorch __init__), layer-stacked
# --------------------------------------------------------------------------
def _linear(key, fan_in, fan_out):
    kw, kb = jax.random.split(key)
    bound = 1.0 / math.sqrt(fan_in)
    w = jax.random.uniform(kw, (fan_in, fan_out), jnp.float32, -bound, bound)
    b = jax.random.uniform(kb, (fan_out,), jnp.float32, -bound, bound)
    return w, b


def make_params(key, vocab_size, max_len, d_k, d_model, n_heads, n_layers, n_classes):
    hdk = d_k * n_heads
    d_ff = 4 * d_model
    keys = jax.random.split(key, 2 + n_layers)
    emb = jax.random.normal(keys[0], (vocab_size, d_model), jnp.float32)

    # positional-encoding buffer (same recipe as the PyTorch module)
    position = jnp.arange(max_len, dtype=jnp.float32)[:, None]
    exp_term = jnp.arange(0, d_model, 2, dtype=jnp.float32)
    div_term = jnp.exp(exp_term * (-math.log(10000.0) / d_model))
    pe = jnp.zeros((max_len, d_model), jnp.float32)
    pe = pe.at[:, 0::2].set(jnp.sin(position * div_term))
    pe = pe.at[:, 1::2].set(jnp.cos(position * div_term))

    ones = jnp.ones((d_model,), jnp.float32)
    zeros = jnp.zeros((d_model,), jnp.float32)
    wqkv, bqkv, wo, pvec, w1, b1, w2 = ([] for _ in range(7))
    for li in range(n_layers):
        ks = jax.random.split(keys[2 + li], 6)
        wq, bq_ = _linear(ks[0], d_model, hdk)
        wk, bk_ = _linear(ks[1], d_model, hdk)
        wv, bv_ = _linear(ks[2], d_model, hdk)
        wo_i, bo_i = _linear(ks[3], hdk, d_model)
        w1_i, b1_i = _linear(ks[4], d_model, d_ff)
        w2_i, b2_i = _linear(ks[5], d_ff, d_model)
        wqkv.append(jnp.concatenate([wq, wk, wv], axis=1))
        bqkv.append(jnp.concatenate([bq_, bk_, bv_])[None, :])
        wo.append(wo_i)
        # packed per-layer vectors: [ln1_g, ln1_b, ln2_g, ln2_b, attn_out_bias, mlp_out_bias]
        pvec.append(jnp.stack([ones, zeros, ones, zeros, bo_i, b2_i]))
        w1.append(w1_i); b1.append(b1_i[None, :]); w2.append(w2_i)

    wfc, bfc = _linear(keys[1], d_model, n_classes)
    wfc_pad = jnp.zeros((d_model, N_CLASS_PAD), jnp.float32).at[:, :n_classes].set(wfc)
    bfc_pad = jnp.zeros((1, N_CLASS_PAD), jnp.float32).at[0, :n_classes].set(bfc)

    bf16 = jnp.bfloat16
    params = dict(
        wqkv=jnp.stack(wqkv).astype(bf16), bqkv=jnp.stack(bqkv),
        wo=jnp.stack(wo).astype(bf16),
        pvec=jnp.stack(pvec),
        w1=jnp.stack(w1).astype(bf16), b1=jnp.stack(b1),
        w2=jnp.stack(w2).astype(bf16),
        lnf=jnp.stack([ones, zeros]),
        wfc=wfc_pad.astype(bf16), bfc=bfc_pad,
    )
    return emb, pe, params


# --------------------------------------------------------------------------
# Pure-JAX reference (PyTorch semantics: exact-erf GELU, exact softmax, f32)
# --------------------------------------------------------------------------
def _ln_ref(x, g, b, eps=1e-5):
    mu = jnp.mean(x, axis=-1, keepdims=True)
    var = jnp.mean((x - mu) ** 2, axis=-1, keepdims=True)
    return (x - mu) / jnp.sqrt(var + eps) * g + b


def reference_forward(x_emb, params, *, n_heads, d_k, n_classes):
    B, T, D = x_emb.shape
    hdk = n_heads * d_k
    x = x_emb
    L = params['wqkv'].shape[0]
    wqkv = params['wqkv'].astype(jnp.float32)
    wo = params['wo'].astype(jnp.float32)
    w1 = params['w1'].astype(jnp.float32)
    w2 = params['w2'].astype(jnp.float32)
    wfc = params['wfc'].astype(jnp.float32)
    pv = params['pvec']
    for l in range(L):
        qkv = x @ wqkv[l] + params['bqkv'][l]
        q, k, v = qkv[..., :hdk], qkv[..., hdk:2 * hdk], qkv[..., 2 * hdk:]
        q = q.reshape(B, T, n_heads, d_k).transpose(0, 2, 1, 3)
        k = k.reshape(B, T, n_heads, d_k).transpose(0, 2, 1, 3)
        v = v.reshape(B, T, n_heads, d_k).transpose(0, 2, 1, 3)
        s = jnp.einsum('bhtd,bhsd->bhts', q, k) / math.sqrt(d_k)
        p = jax.nn.softmax(s, axis=-1)
        a = jnp.einsum('bhts,bhsd->bhtd', p, v).transpose(0, 2, 1, 3).reshape(B, T, hdk)
        attn = a @ wo[l] + pv[l, 4]
        h1 = _ln_ref(x + attn, pv[l, 0], pv[l, 1])
        f1 = h1 @ w1[l] + params['b1'][l]
        g = 0.5 * f1 * (1.0 + jax.lax.erf(f1 / math.sqrt(2.0)))
        f2 = g @ w2[l] + pv[l, 5]
        x = _ln_ref(h1 + f2, pv[l, 2], pv[l, 3])
    cls = _ln_ref(x[:, 0, :], params['lnf'][0], params['lnf'][1])
    return (cls @ wfc + params['bfc'])[:, :n_classes]


if __name__ == "__main__":
    # small shapes consistent with the module
    vocab_size, max_len = 100, 64
    d_k, d_model, n_heads = 8, 32, 4
    n_layers, n_classes = 2, 4
    B, T = 2, 8

    key = jax.random.PRNGKey(0)
    kp, kt = jax.random.split(key)
    emb, pe, params = make_params(kp, vocab_size, max_len, d_k, d_model,
                                  n_heads, n_layers, n_classes)
    tokens = jax.random.randint(kt, (B, T), 0, vocab_size, dtype=jnp.int32)

    # TODO(synk): token-embedding gather + positional-encoding add stay in plain
    # JAX (data-dependent gather has no clean rectangular BlockSpec at this size).
    x_emb = emb[tokens] + pe[None, :T, :]

    out = encoder_pallas(x_emb, params, n_heads=n_heads, d_k=d_k,
                         n_classes=n_classes)
    out = jax.block_until_ready(out)

    with jax.default_matmul_precision('float32'):
        ref = reference_forward(x_emb, params, n_heads=n_heads, d_k=d_k,
                                n_classes=n_classes)
    ref = jax.block_until_ready(ref)

    assert out.shape == (B, n_classes) and out.dtype == jnp.float32
    assert bool(jnp.all(jnp.isfinite(out)))
    max_err = float(jnp.max(jnp.abs(out - ref)))
    # bf16 MXU inputs + tanh-approx GELU + approx softmax reciprocal vs f32/erf ref
    assert max_err < 5e-2, f"mismatch vs pure-JAX reference: {max_err}"
    print("KERNEL_OK")
</pallas_src>

<mosaic_0001>
module attributes {stable_mosaic.version = 11 : i64} {
  func.func @encoder_kernel(%arg0: i32, %arg1: i32, %arg2: memref<16x32xf32, #tpu.memory_space<any>>, %arg3: memref<1x32x96xbf16, #tpu.memory_space<vmem>>, %arg4: memref<1x1x96xf32, #tpu.memory_space<vmem>>, %arg5: memref<1x32x32xbf16, #tpu.memory_space<vmem>>, %arg6: memref<1x6x32xf32, #tpu.memory_space<vmem>>, %arg7: memref<1x32x128xbf16, #tpu.memory_space<vmem>>, %arg8: memref<1x1x128xf32, #tpu.memory_space<vmem>>, %arg9: memref<1x128x32xbf16, #tpu.memory_space<vmem>>, %arg10: memref<2x32xf32, #tpu.memory_space<vmem>>, %arg11: memref<32x128xbf16, #tpu.memory_space<vmem>>, %arg12: memref<1x128xf32, #tpu.memory_space<vmem>>, %arg13: memref<1x1x128xf32, #tpu.memory_space<vmem>>, %arg14: memref<8x32xf32, #tpu.memory_space<vmem>>, %arg15: memref<8x32xf32, #tpu.memory_space<vmem>>, %arg16: memref<!tpu.dma_semaphore, #tpu.memory_space<semaphore_mem>>) attributes {dimension_semantics = [#tpu.dimension_semantics<parallel>, #tpu.dimension_semantics<arbitrary>], iteration_bounds = array<i64: 2, 2>, scalar_prefetch = 0 : i64, scratch_operands = 3 : i64, tpu.core_type = #tpu.core_type<tc>, window_params = [{}, {transform_indices = @transform_1, window_bounds = array<i64: 1, 32, 96>}, {transform_indices = @transform_2, window_bounds = array<i64: 1, 1, 96>}, {transform_indices = @transform_3, window_bounds = array<i64: 1, 32, 32>}, {transform_indices = @transform_4, window_bounds = array<i64: 1, 6, 32>}, {transform_indices = @transform_5, window_bounds = array<i64: 1, 32, 128>}, {transform_indices = @transform_6, window_bounds = array<i64: 1, 1, 128>}, {transform_indices = @transform_7, window_bounds = array<i64: 1, 128, 32>}, {pipeline_mode = #tpu.pipeline_mode<synchronous>, transform_indices = @transform_8, window_bounds = array<i64: 2, 32>}, {pipeline_mode = #tpu.pipeline_mode<synchronous>, transform_indices = @transform_9, window_bounds = array<i64: 32, 128>}, {pipeline_mode = #tpu.pipeline_mode<synchronous>, transform_indices = @transform_10, window_bounds = array<i64: 1, 128>}, {transform_indices = @transform_11, window_bounds = array<i64: 1, 1, 128>}]} {
    %c0_i32 = arith.constant 0 : i32
    %0 = arith.cmpi eq, %arg1, %c0_i32 : i32
    %1 = arith.extui %0 : i1 to i32
    %c0_i32_0 = arith.constant 0 : i32
    %2 = arith.cmpi ne, %1, %c0_i32_0 : i32
    scf.if %2 {
      %c8_i32 = arith.constant 8 : i32
      %214 = arith.muli %arg0, %c8_i32 : i32
      %215 = tpu.assume_multiple %214, 8 : i32
      %c0_i32_81 = arith.constant 0 : i32
      %216 = tpu.memref_slice %arg2[%215, %c0_i32_81] : memref<16x32xf32, #tpu.memory_space<any>> -> memref<8x32xf32, #tpu.memory_space<any>>
      tpu.enqueue_dma source(%216 : memref<8x32xf32, #tpu.memory_space<any>>) target(%arg14 : memref<8x32xf32, #tpu.memory_space<vmem>>) target_semaphore(%arg16 : memref<!tpu.dma_semaphore, #tpu.memory_space<semaphore_mem>>)
      %c0_i32_82 = arith.constant 0 : i32
      %217 = tpu.memref_slice %arg2[%215, %c0_i32_82] : memref<16x32xf32, #tpu.memory_space<any>> -> memref<8x32xf32, #tpu.memory_space<any>>
      tpu.wait_dma2 semaphore(%arg16 : memref<!tpu.dma_semaphore, #tpu.memory_space<semaphore_mem>>) src(%217 : memref<8x32xf32, #tpu.memory_space<any>>) dst(%arg14 : memref<8x32xf32, #tpu.memory_space<vmem>>)
    } else {
    }
    %c0 = arith.constant 0 : index
    %c0_1 = arith.constant 0 : index
    %3 = vector.load %arg14[%c0, %c0_1] : memref<8x32xf32, #tpu.memory_space<vmem>>, vector<8x32xf32>
    %4 = arith.truncf %3 : vector<8x32xf32> to vector<8x32xbf16>
    %c0_2 = arith.constant 0 : index
    %c0_3 = arith.constant 0 : index
    %c0_4 = arith.constant 0 : index
    %5 = vector.load %arg3[%c0_2, %c0_3, %c0_4] : memref<1x32x96xbf16, #tpu.memory_space<vmem>>, vector<1x32x96xbf16>
    %6 = vector.shape_cast %5 : vector<1x32x96xbf16> to vector<32x96xbf16>
    %cst = arith.constant dense<0.000000e+00> : vector<8x96xf32>
    %7 = tpu.matmul %4, %6, %cst {dimension_numbers = #tpu.dot_dimension_numbers<[1], [0], [0], [1], [0, 0, 1, 1], [], []>} : vector<8x32xbf16>, vector<32x96xbf16>, vector<8x96xf32> -> vector<8x96xf32>
    %c0_5 = arith.constant 0 : index
    %c0_6 = arith.constant 0 : index
    %c0_7 = arith.constant 0 : index
    %8 = vector.load %arg4[%c0_5, %c0_6, %c0_7] : memref<1x1x96xf32, #tpu.memory_space<vmem>>, vector<1x1x96xf32>
    %9 = vector.shape_cast %8 : vector<1x1x96xf32> to vector<1x96xf32>
    %10 = vector.broadcast %9 : vector<1x96xf32> to vector<8x96xf32>
    %11 = arith.addf %7, %10 : vector<8x96xf32>
    %12 = vector.extract_strided_slice %11 {offsets = [0, 0], sizes = [8, 8], strides = [1, 1]} : vector<8x96xf32> to vector<8x8xf32>
    %13 = vector.shape_cast %12 : vector<8x8xf32> to vector<1x8x8xf32>
    %14 = arith.truncf %13 : vector<1x8x8xf32> to vector<1x8x8xbf16>
    %15 = vector.extract_strided_slice %11 {offsets = [0, 32], sizes = [8, 8], strides = [1, 1]} : vector<8x96xf32> to vector<8x8xf32>
    %16 = vector.shape_cast %15 : vector<8x8xf32> to vector<1x8x8xf32>
    %17 = arith.truncf %16 : vector<1x8x8xf32> to vector<1x8x8xbf16>
    %18 = vector.extract_strided_slice %11 {offsets = [0, 64], sizes = [8, 8], strides = [1, 1]} : vector<8x96xf32> to vector<8x8xf32>
    %19 = vector.shape_cast %18 : vector<8x8xf32> to vector<1x8x8xf32>
    %20 = arith.truncf %19 : vector<1x8x8xf32> to vector<1x8x8xbf16>
    "tpu.trace_start"() <{level = 10 : i32, message = "btd,bsd->bts"}> : () -> ()
    %cst_8 = arith.constant dense<0.000000e+00> : vector<1x8x8xf32>
    %21 = tpu.matmul %14, %17, %cst_8 {dimension_numbers = #tpu.dot_dimension_numbers<[2], [2], [1], [1], [0, 0, 0, 1, 1, 1], [0], [0]>} : vector<1x8x8xbf16>, vector<1x8x8xbf16>, vector<1x8x8xf32> -> vector<1x8x8xf32>
    "tpu.trace_stop"() : () -> ()
    %cst_9 = arith.constant 0.353553385 : f32
    %22 = vector.broadcast %cst_9 : f32 to vector<1x8x8xf32>
    %23 = arith.mulf %21, %22 : vector<1x8x8xf32>
    %cst_10 = arith.constant dense<0xFF800000> : vector<1x8xf32>
    %24 = vector.multi_reduction <maximumf>, %23, %cst_10 [2] : vector<1x8x8xf32> to vector<1x8xf32>
    %25 = vector.shape_cast %24 : vector<1x8xf32> to vector<1x8x1xf32>
    %26 = vector.broadcast %25 : vector<1x8x1xf32> to vector<1x8x8xf32>
    %27 = arith.subf %23, %26 : vector<1x8x8xf32>
    %28 = math.exp %27 : vector<1x8x8xf32>
    %cst_11 = arith.constant dense<0.000000e+00> : vector<1x8xf32>
    %29 = vector.multi_reduction <add>, %28, %cst_11 [2] : vector<1x8x8xf32> to vector<1x8xf32>
    %30 = vector.shape_cast %29 : vector<1x8xf32> to vector<1x8x1xf32>
    %31 = tpu.reciprocal %30 {approx = true} : vector<1x8x1xf32> -> vector<1x8x1xf32>
    %32 = vector.broadcast %31 : vector<1x8x1xf32> to vector<1x8x8xf32>
    %33 = arith.mulf %28, %32 : vector<1x8x8xf32>
    %34 = arith.truncf %33 : vector<1x8x8xf32> to vector<1x8x8xbf16>
    "tpu.trace_start"() <{level = 10 : i32, message = "bts,bsd->btd"}> : () -> ()
    %cst_12 = arith.constant dense<0.000000e+00> : vector<1x8x8xf32>
    %35 = tpu.matmul %34, %20, %cst_12 {dimension_numbers = #tpu.dot_dimension_numbers<[2], [1], [1], [2], [0, 0, 0, 1, 1, 2], [0], [0]>} : vector<1x8x8xbf16>, vector<1x8x8xbf16>, vector<1x8x8xf32> -> vector<1x8x8xf32>
    "tpu.trace_stop"() : () -> ()
    %36 = vector.shape_cast %35 : vector<1x8x8xf32> to vector<8x8xf32>
    %c0_13 = arith.constant 0 : index
    %c0_14 = arith.constant 0 : index
    %37 = vector.load %arg15[%c0_13, %c0_14] : memref<8x32xf32, #tpu.memory_space<vmem>>, vector<8x8xf32>
    tpu.vector_store %arg15[%c0_13, %c0_14], %36 {strides = array<i32>} : memref<8x32xf32, #tpu.memory_space<vmem>>, vector<8x8xf32>,
    %38 = vector.extract_strided_slice %11 {offsets = [0, 8], sizes = [8, 8], strides = [1, 1]} : vector<8x96xf32> to vector<8x8xf32>
    %39 = vector.shape_cast %38 : vector<8x8xf32> to vector<1x8x8xf32>
    %40 = arith.truncf %39 : vector<1x8x8xf32> to vector<1x8x8xbf16>
    %41 = vector.extract_strided_slice %11 {offsets = [0, 40], sizes = [8, 8], strides = [1, 1]} : vector<8x96xf32> to vector<8x8xf32>
    %42 = vector.shape_cast %41 : vector<8x8xf32> to vector<1x8x8xf32>
    %43 = arith.truncf %42 : vector<1x8x8xf32> to vector<1x8x8xbf16>
    %44 = vector.extract_strided_slice %11 {offsets = [0, 72], sizes = [8, 8], strides = [1, 1]} : vector<8x96xf32> to vector<8x8xf32>
    %45 = vector.shape_cast %44 : vector<8x8xf32> to vector<1x8x8xf32>
    %46 = arith.truncf %45 : vector<1x8x8xf32> to vector<1x8x8xbf16>
    "tpu.trace_start"() <{level = 10 : i32, message = "btd,bsd->bts"}> : () -> ()
    %cst_15 = arith.constant dense<0.000000e+00> : vector<1x8x8xf32>
    %47 = tpu.matmul %40, %43, %cst_15 {dimension_numbers = #tpu.dot_dimension_numbers<[2], [2], [1], [1], [0, 0, 0, 1, 1, 1], [0], [0]>} : vector<1x8x8xbf16>, vector<1x8x8xbf16>, vector<1x8x8xf32> -> vector<1x8x8xf32>
    "tpu.trace_stop"() : () -> ()
    %cst_16 = arith.constant 0.353553385 : f32
    %48 = vector.broadcast %cst_16 : f32 to vector<1x8x8xf32>
    %49 = arith.mulf %47, %48 : vector<1x8x8xf32>
    %cst_17 = arith.constant dense<0xFF800000> : vector<1x8xf32>
    %50 = vector.multi_reduction <maximumf>, %49, %cst_17 [2] : vector<1x8x8xf32> to vector<1x8xf32>
    %51 = vector.shape_cast %50 : vector<1x8xf32> to vector<1x8x1xf32>
    %52 = vector.broadcast %51 : vector<1x8x1xf32> to vector<1x8x8xf32>
    %53 = arith.subf %49, %52 : vector<1x8x8xf32>
    %54 = math.exp %53 : vector<1x8x8xf32>
    %cst_18 = arith.constant dense<0.000000e+00> : vector<1x8xf32>
    %55 = vector.multi_reduction <add>, %54, %cst_18 [2] : vector<1x8x8xf32> to vector<1x8xf32>
    %56 = vector.shape_cast %55 : vector<1x8xf32> to vector<1x8x1xf32>
    %57 = tpu.reciprocal %56 {approx = true} : vector<1x8x1xf32> -> vector<1x8x1xf32>
    %58 = vector.broadcast %57 : vector<1x8x1xf32> to vector<1x8x8xf32>
    %59 = arith.mulf %54, %58 : vector<1x8x8xf32>
    %60 = arith.truncf %59 : vector<1x8x8xf32> to vector<1x8x8xbf16>
    "tpu.trace_start"() <{level = 10 : i32, message = "bts,bsd->btd"}> : () -> ()
    %cst_19 = arith.constant dense<0.000000e+00> : vector<1x8x8xf32>
    %61 = tpu.matmul %60, %46, %cst_19 {dimension_numbers = #tpu.dot_dimension_numbers<[2], [1], [1], [2], [0, 0, 0, 1, 1, 2], [0], [0]>} : vector<1x8x8xbf16>, vector<1x8x8xbf16>, vector<1x8x8xf32> -> vector<1x8x8xf32>
    "tpu.trace_stop"() : () -> ()
    %62 = vector.shape_cast %61 : vector<1x8x8xf32> to vector<8x8xf32>
    %c0_20 = arith.constant 0 : index
    %c8 = arith.constant 8 : index
    %63 = vector.load %arg15[%c0_20, %c8] : memref<8x32xf32, #tpu.memory_space<vmem>>, vector<8x8xf32>
    tpu.vector_store %arg15[%c0_20, %c8], %62 {strides = array<i32>} : memref<8x32xf32, #tpu.memory_space<vmem>>, vector<8x8xf32>,
    %64 = vector.extract_strided_slice %11 {offsets = [0, 16], sizes = [8, 8], strides = [1, 1]} : vector<8x96xf32> to vector<8x8xf32>
    %65 = vector.shape_cast %64 : vector<8x8xf32> to vector<1x8x8xf32>
    %66 = arith.truncf %65 : vector<1x8x8xf32> to vector<1x8x8xbf16>
    %67 = vector.extract_strided_slice %11 {offsets = [0, 48], sizes = [8, 8], strides = [1, 1]} : vector<8x96xf32> to vector<8x8xf32>
    %68 = vector.shape_cast %67 : vector<8x8xf32> to vector<1x8x8xf32>
    %69 = arith.truncf %68 : vector<1x8x8xf32> to vector<1x8x8xbf16>
    %70 = vector.extract_strided_slice %11 {offsets = [0, 80], sizes = [8, 8], strides = [1, 1]} : vector<8x96xf32> to vector<8x8xf32>
    %71 = vector.shape_cast %70 : vector<8x8xf32> to vector<1x8x8xf32>
    %72 = arith.truncf %71 : vector<1x8x8xf32> to vector<1x8x8xbf16>
    "tpu.trace_start"() <{level = 10 : i32, message = "btd,bsd->bts"}> : () -> ()
    %cst_21 = arith.constant dense<0.000000e+00> : vector<1x8x8xf32>
    %73 = tpu.matmul %66, %69, %cst_21 {dimension_numbers = #tpu.dot_dimension_numbers<[2], [2], [1], [1], [0, 0, 0, 1, 1, 1], [0], [0]>} : vector<1x8x8xbf16>, vector<1x8x8xbf16>, vector<1x8x8xf32> -> vector<1x8x8xf32>
    "tpu.trace_stop"() : () -> ()
    %cst_22 = arith.constant 0.353553385 : f32
    %74 = vector.broadcast %cst_22 : f32 to vector<1x8x8xf32>
    %75 = arith.mulf %73, %74 : vector<1x8x8xf32>
    %cst_23 = arith.constant dense<0xFF800000> : vector<1x8xf32>
    %76 = vector.multi_reduction <maximumf>, %75, %cst_23 [2] : vector<1x8x8xf32> to vector<1x8xf32>
    %77 = vector.shape_cast %76 : vector<1x8xf32> to vector<1x8x1xf32>
    %78 = vector.broadcast %77 : vector<1x8x1xf32> to vector<1x8x8xf32>
    %79 = arith.subf %75, %78 : vector<1x8x8xf32>
    %80 = math.exp %79 : vector<1x8x8xf32>
    %cst_24 = arith.constant dense<0.000000e+00> : vector<1x8xf32>
    %81 = vector.multi_reduction <add>, %80, %cst_24 [2] : vector<1x8x8xf32> to vector<1x8xf32>
    %82 = vector.shape_cast %81 : vector<1x8xf32> to vector<1x8x1xf32>
    %83 = tpu.reciprocal %82 {approx = true} : vector<1x8x1xf32> -> vector<1x8x1xf32>
    %84 = vector.broadcast %83 : vector<1x8x1xf32> to vector<1x8x8xf32>
    %85 = arith.mulf %80, %84 : vector<1x8x8xf32>
    %86 = arith.truncf %85 : vector<1x8x8xf32> to vector<1x8x8xbf16>
    "tpu.trace_start"() <{level = 10 : i32, message = "bts,bsd->btd"}> : () -> ()
    %cst_25 = arith.constant dense<0.000000e+00> : vector<1x8x8xf32>
    %87 = tpu.matmul %86, %72, %cst_25 {dimension_numbers = #tpu.dot_dimension_numbers<[2], [1], [1], [2], [0, 0, 0, 1, 1, 2], [0], [0]>} : vector<1x8x8xbf16>, vector<1x8x8xbf16>, vector<1x8x8xf32> -> vector<1x8x8xf32>
    "tpu.trace_stop"() : () -> ()
    %88 = vector.shape_cast %87 : vector<1x8x8xf32> to vector<8x8xf32>
    %c0_26 = arith.constant 0 : index
    %c16 = arith.constant 16 : index
    %89 = vector.load %arg15[%c0_26, %c16] : memref<8x32xf32, #tpu.memory_space<vmem>>, vector<8x8xf32>
    tpu.vector_store %arg15[%c0_26, %c16], %88 {strides = array<i32>} : memref<8x32xf32, #tpu.memory_space<vmem>>, vector<8x8xf32>,
    %90 = vector.extract_strided_slice %11 {offsets = [0, 24], sizes = [8, 8], strides = [1, 1]} : vector<8x96xf32> to vector<8x8xf32>
    %91 = vector.shape_cast %90 : vector<8x8xf32> to vector<1x8x8xf32>
    %92 = arith.truncf %91 : vector<1x8x8xf32> to vector<1x8x8xbf16>
    %93 = vector.extract_strided_slice %11 {offsets = [0, 56], sizes = [8, 8], strides = [1, 1]} : vector<8x96xf32> to vector<8x8xf32>
    %94 = vector.shape_cast %93 : vector<8x8xf32> to vector<1x8x8xf32>
    %95 = arith.truncf %94 : vector<1x8x8xf32> to vector<1x8x8xbf16>
    %96 = vector.extract_strided_slice %11 {offsets = [0, 88], sizes = [8, 8], strides = [1, 1]} : vector<8x96xf32> to vector<8x8xf32>
    %97 = vector.shape_cast %96 : vector<8x8xf32> to vector<1x8x8xf32>
    %98 = arith.truncf %97 : vector<1x8x8xf32> to vector<1x8x8xbf16>
    "tpu.trace_start"() <{level = 10 : i32, message = "btd,bsd->bts"}> : () -> ()
    %cst_27 = arith.constant dense<0.000000e+00> : vector<1x8x8xf32>
    %99 = tpu.matmul %92, %95, %cst_27 {dimension_numbers = #tpu.dot_dimension_numbers<[2], [2], [1], [1], [0, 0, 0, 1, 1, 1], [0], [0]>} : vector<1x8x8xbf16>, vector<1x8x8xbf16>, vector<1x8x8xf32> -> vector<1x8x8xf32>
    "tpu.trace_stop"() : () -> ()
    %cst_28 = arith.constant 0.353553385 : f32
    %100 = vector.broadcast %cst_28 : f32 to vector<1x8x8xf32>
    %101 = arith.mulf %99, %100 : vector<1x8x8xf32>
    %cst_29 = arith.constant dense<0xFF800000> : vector<1x8xf32>
    %102 = vector.multi_reduction <maximumf>, %101, %cst_29 [2] : vector<1x8x8xf32> to vector<1x8xf32>
    %103 = vector.shape_cast %102 : vector<1x8xf32> to vector<1x8x1xf32>
    %104 = vector.broadcast %103 : vector<1x8x1xf32> to vector<1x8x8xf32>
    %105 = arith.subf %101, %104 : vector<1x8x8xf32>
    %106 = math.exp %105 : vector<1x8x8xf32>
    %cst_30 = arith.constant dense<0.000000e+00> : vector<1x8xf32>
    %107 = vector.multi_reduction <add>, %106, %cst_30 [2] : vector<1x8x8xf32> to vector<1x8xf32>
    %108 = vector.shape_cast %107 : vector<1x8xf32> to vector<1x8x1xf32>
    %109 = tpu.reciprocal %108 {approx = true} : vector<1x8x1xf32> -> vector<1x8x1xf32>
    %110 = vector.broadcast %109 : vector<1x8x1xf32> to vector<1x8x8xf32>
    %111 = arith.mulf %106, %110 : vector<1x8x8xf32>
    %112 = arith.truncf %111 : vector<1x8x8xf32> to vector<1x8x8xbf16>
    "tpu.trace_start"() <{level = 10 : i32, message = "bts,bsd->btd"}> : () -> ()
    %cst_31 = arith.constant dense<0.000000e+00> : vector<1x8x8xf32>
    %113 = tpu.matmul %112, %98, %cst_31 {dimension_numbers = #tpu.dot_dimension_numbers<[2], [1], [1], [2], [0, 0, 0, 1, 1, 2], [0], [0]>} : vector<1x8x8xbf16>, vector<1x8x8xbf16>, vector<1x8x8xf32> -> vector<1x8x8xf32>
    "tpu.trace_stop"() : () -> ()
    %114 = vector.shape_cast %113 : vector<1x8x8xf32> to vector<8x8xf32>
    %c0_32 = arith.constant 0 : index
    %c24 = arith.constant 24 : index
    %115 = vector.load %arg15[%c0_32, %c24] : memref<8x32xf32, #tpu.memory_space<vmem>>, vector<8x8xf32>
    tpu.vector_store %arg15[%c0_32, %c24], %114 {strides = array<i32>} : memref<8x32xf32, #tpu.memory_space<vmem>>, vector<8x8xf32>,
    %c0_33 = arith.constant 0 : index
    %c0_34 = arith.constant 0 : index
    %116 = vector.load %arg15[%c0_33, %c0_34] : memref<8x32xf32, #tpu.memory_space<vmem>>, vector<8x32xf32>
    %117 = arith.truncf %116 : vector<8x32xf32> to vector<8x32xbf16>
    %c0_35 = arith.constant 0 : index
    %c0_36 = arith.constant 0 : index
    %c0_37 = arith.constant 0 : index
    %118 = vector.load %arg5[%c0_35, %c0_36, %c0_37] : memref<1x32x32xbf16, #tpu.memory_space<vmem>>, vector<1x32x32xbf16>
    %119 = vector.shape_cast %118 : vector<1x32x32xbf16> to vector<32x32xbf16>
    %cst_38 = arith.constant dense<0.000000e+00> : vector<8x32xf32>
    %120 = tpu.matmul %117, %119, %cst_38 {dimension_numbers = #tpu.dot_dimension_numbers<[1], [0], [0], [1], [0, 0, 1, 1], [], []>} : vector<8x32xbf16>, vector<32x32xbf16>, vector<8x32xf32> -> vector<8x32xf32>
    %c0_39 = arith.constant 0 : index
    %c4 = arith.constant 4 : index
    %c0_40 = arith.constant 0 : index
    %121 = vector.load %arg6[%c0_39, %c4, %c0_40] : memref<1x6x32xf32, #tpu.memory_space<vmem>>, vector<1x1x32xf32>
    %122 = vector.shape_cast %121 : vector<1x1x32xf32> to vector<1x32xf32>
    %123 = vector.broadcast %122 : vector<1x32xf32> to vector<8x32xf32>
    %124 = arith.addf %120, %123 : vector<8x32xf32>
    %125 = arith.addf %3, %124 : vector<8x32xf32>
    %c0_41 = arith.constant 0 : index
    %c0_42 = arith.constant 0 : index
    %c0_43 = arith.constant 0 : index
    %126 = vector.load %arg6[%c0_41, %c0_42, %c0_43] : memref<1x6x32xf32, #tpu.memory_space<vmem>>, vector<1x1x32xf32>
    %127 = vector.shape_cast %126 : vector<1x1x32xf32> to vector<1x32xf32>
    %c0_44 = arith.constant 0 : index
    %c1 = arith.constant 1 : index
    %c0_45 = arith.constant 0 : index
    %128 = vector.load %arg6[%c0_44, %c1, %c0_45] : memref<1x6x32xf32, #tpu.memory_space<vmem>>, vector<1x1x32xf32>
    %129 = vector.shape_cast %128 : vector<1x1x32xf32> to vector<1x32xf32>
    %cst_46 = arith.constant dense<0.000000e+00> : vector<8xf32>
    %130 = vector.multi_reduction <add>, %125, %cst_46 [1] : vector<8x32xf32> to vector<8xf32>
    %131 = vector.shape_cast %130 : vector<8xf32> to vector<8x1xf32>
    %cst_47 = arith.constant 3.200000e+01 : f32
    %132 = vector.broadcast %cst_47 : f32 to vector<8x1xf32>
    %133 = arith.divf %131, %132 : vector<8x1xf32>
    %134 = vector.broadcast %133 : vector<8x1xf32> to vector<8x32xf32>
    %135 = arith.subf %125, %134 : vector<8x32xf32>
    %136 = arith.mulf %135, %135 : vector<8x32xf32>
    %cst_48 = arith.constant dense<0.000000e+00> : vector<8xf32>
    %137 = vector.multi_reduction <add>, %136, %cst_48 [1] : vector<8x32xf32> to vector<8xf32>
    %138 = vector.shape_cast %137 : vector<8xf32> to vector<8x1xf32>
    %cst_49 = arith.constant 3.200000e+01 : f32
    %139 = vector.broadcast %cst_49 : f32 to vector<8x1xf32>
    %140 = arith.divf %138, %139 : vector<8x1xf32>
    %141 = vector.broadcast %133 : vector<8x1xf32> to vector<8x32xf32>
    %142 = arith.subf %125, %141 : vector<8x32xf32>
    %cst_50 = arith.constant 9.99999974E-6 : f32
    %143 = vector.broadcast %cst_50 : f32 to vector<8x1xf32>
    %144 = arith.addf %140, %143 : vector<8x1xf32>
    %145 = math.rsqrt %144 : vector<8x1xf32>
    %146 = vector.broadcast %145 : vector<8x1xf32> to vector<8x32xf32>
    %147 = arith.mulf %142, %146 : vector<8x32xf32>
    %148 = vector.broadcast %127 : vector<1x32xf32> to vector<8x32xf32>
    %149 = arith.mulf %147, %148 : vector<8x32xf32>
    %150 = vector.broadcast %129 : vector<1x32xf32> to vector<8x32xf32>
    %151 = arith.addf %149, %150 : vector<8x32xf32>
    %152 = arith.truncf %151 : vector<8x32xf32> to vector<8x32xbf16>
    %cst_51 = arith.constant 0.000000e+00 : f32
    %153 = vector.broadcast %cst_51 : f32 to vector<8x32xf32>
    %c0_52 = arith.constant 0 : index
    %c0_53 = arith.constant 0 : index
    %c0_54 = arith.constant 0 : index
    %154 = vector.load %arg7[%c0_52, %c0_53, %c0_54] : memref<1x32x128xbf16, #tpu.memory_space<vmem>>, vector<1x32x128xbf16>
    %155 = vector.shape_cast %154 : vector<1x32x128xbf16> to vector<32x128xbf16>
    %cst_55 = arith.constant dense<0.000000e+00> : vector<8x128xf32>
    %156 = tpu.matmul %152, %155, %cst_55 {dimension_numbers = #tpu.dot_dimension_numbers<[1], [0], [0], [1], [0, 0, 1, 1], [], []>} : vector<8x32xbf16>, vector<32x128xbf16>, vector<8x128xf32> -> vector<8x128xf32>
    %c0_56 = arith.constant 0 : index
    %c0_57 = arith.constant 0 : index
    %c0_58 = arith.constant 0 : index
    %157 = vector.load %arg8[%c0_56, %c0_57, %c0_58] : memref<1x1x128xf32, #tpu.memory_space<vmem>>, vector<1x1x128xf32>
    %158 = vector.shape_cast %157 : vector<1x1x128xf32> to vector<1x128xf32>
    %159 = vector.broadcast %158 : vector<1x128xf32> to vector<8x128xf32>
    %160 = arith.addf %156, %159 : vector<8x128xf32>
    %161 = arith.mulf %160, %160 : vector<8x128xf32>
    %162 = arith.mulf %160, %161 : vector<8x128xf32>
    %cst_59 = arith.constant 4.471500e-02 : f32
    %163 = vector.broadcast %cst_59 : f32 to vector<8x128xf32>
    %164 = arith.mulf %163, %162 : vector<8x128xf32>
    %165 = arith.addf %160, %164 : vector<8x128xf32>
    %cst_60 = arith.constant 0.797884583 : f32
    %166 = vector.broadcast %cst_60 : f32 to vector<8x128xf32>
    %167 = arith.mulf %166, %165 : vector<8x128xf32>
    %168 = math.tanh %167 : vector<8x128xf32>
    %cst_61 = arith.constant 1.000000e+00 : f32
    %169 = vector.broadcast %cst_61 : f32 to vector<8x128xf32>
    %170 = arith.addf %169, %168 : vector<8x128xf32>
    %cst_62 = arith.constant 5.000000e-01 : f32
    %171 = vector.broadcast %cst_62 : f32 to vector<8x128xf32>
    %172 = arith.mulf %171, %170 : vector<8x128xf32>
    %173 = arith.mulf %160, %172 : vector<8x128xf32>
    %174 = arith.truncf %173 : vector<8x128xf32> to vector<8x128xbf16>
    %c0_63 = arith.constant 0 : index
    %c0_64 = arith.constant 0 : index
    %c0_65 = arith.constant 0 : index
    %175 = vector.load %arg9[%c0_63, %c0_64, %c0_65] : memref<1x128x32xbf16, #tpu.memory_space<vmem>>, vector<1x128x32xbf16>
    %176 = vector.shape_cast %175 : vector<1x128x32xbf16> to vector<128x32xbf16>
    %cst_66 = arith.constant dense<0.000000e+00> : vector<8x32xf32>
    %177 = tpu.matmul %174, %176, %cst_66 {dimension_numbers = #tpu.dot_dimension_numbers<[1], [0], [0], [1], [0, 0, 1, 1], [], []>} : vector<8x128xbf16>, vector<128x32xbf16>, vector<8x32xf32> -> vector<8x32xf32>
    %178 = arith.addf %153, %177 : vector<8x32xf32>
    %c0_67 = arith.constant 0 : index
    %c5 = arith.constant 5 : index
    %c0_68 = arith.constant 0 : index
    %179 = vector.load %arg6[%c0_67, %c5, %c0_68] : memref<1x6x32xf32, #tpu.memory_space<vmem>>, vector<1x1x32xf32>
    %180 = vector.shape_cast %179 : vector<1x1x32xf32> to vector<1x32xf32>
    %181 = vector.broadcast %180 : vector<1x32xf32> to vector<8x32xf32>
    %182 = arith.addf %178, %181 : vector<8x32xf32>
    %183 = arith.addf %151, %182 : vector<8x32xf32>
    %c0_69 = arith.constant 0 : index
    %c2 = arith.constant 2 : index
    %c0_70 = arith.constant 0 : index
    %184 = vector.load %arg6[%c0_69, %c2, %c0_70] : memref<1x6x32xf32, #tpu.memory_space<vmem>>, vector<1x1x32xf32>
    %185 = vector.shape_cast %184 : vector<1x1x32xf32> to vector<1x32xf32>
    %c0_71 = arith.constant 0 : index
    %c3 = arith.constant 3 : index
    %c0_72 = arith.constant 0 : index
    %186 = vector.load %arg6[%c0_71, %c3, %c0_72] : memref<1x6x32xf32, #tpu.memory_space<vmem>>, vector<1x1x32xf32>
    %187 = vector.shape_cast %186 : vector<1x1x32xf32> to vector<1x32xf32>
    %cst_73 = arith.constant dense<0.000000e+00> : vector<8xf32>
    %188 = vector.multi_reduction <add>, %183, %cst_73 [1] : vector<8x32xf32> to vector<8xf32>
    %189 = vector.shape_cast %188 : vector<8xf32> to vector<8x1xf32>
    %cst_74 = arith.constant 3.200000e+01 : f32
    %190 = vector.broadcast %cst_74 : f32 to vector<8x1xf32>
    %191 = arith.divf %189, %190 : vector<8x1xf32>
    %192 = vector.broadcast %191 : vector<8x1xf32> to vector<8x32xf32>
    %193 = arith.subf %183, %192 : vector<8x32xf32>
    %194 = arith.mulf %193, %193 : vector<8x32xf32>
    %cst_75 = arith.constant dense<0.000000e+00> : vector<8xf32>
    %195 = vector.multi_reduction <add>, %194, %cst_75 [1] : vector<8x32xf32> to vector<8xf32>
    %196 = vector.shape_cast %195 : vector<8xf32> to vector<8x1xf32>
    %cst_76 = arith.constant 3.200000e+01 : f32
    %197 = vector.broadcast %cst_76 : f32 to vector<8x1xf32>
    %198 = arith.divf %196, %197 : vector<8x1xf32>
    %199 = vector.broadcast %191 : vector<8x1xf32> to vector<8x32xf32>
    %200 = arith.subf %183, %199 : vector<8x32xf32>
    %cst_77 = arith.constant 9.99999974E-6 : f32
    %201 = vector.broadcast %cst_77 : f32 to vector<8x1xf32>
    %202 = arith.addf %198, %201 : vector<8x1xf32>
    %203 = math.rsqrt %202 : vector<8x1xf32>
    %204 = vector.broadcast %203 : vector<8x1xf32> to vector<8x32xf32>
    %205 = arith.mulf %200, %204 : vector<8x32xf32>
    %206 = vector.broadcast %185 : vector<1x32xf32> to vector<8x32xf32>
    %207 = arith.mulf %205, %206 : vector<8x32xf32>
    %208 = vector.broadcast %187 : vector<1x32xf32> to vector<8x32xf32>
    %209 = arith.addf %207, %208 : vector<8x32xf32>
    %c0_78 = arith.constant 0 : index
    %c0_79 = arith.constant 0 : index
    %210 = vector.load %arg14[%c0_78, %c0_79] : memref<8x32xf32, #tpu.memory_space<vmem>>, vector<8x32xf32>
    tpu.vector_store %arg14[%c0_78, %c0_79], %209 {strides = array<i32>} : memref<8x32xf32, #tpu.memory_space<vmem>>, vector<8x32xf32>,
    %c1_i32 = arith.constant 1 : i32
    %211 = arith.cmpi eq, %arg1, %c1_i32 : i32
    %212 = arith.extui %211 : i1 to i32
    %c0_i32_80 = arith.constant 0 : i32
    %213 = arith.cmpi ne, %212, %c0_i32_80 : i32
    scf.if %213 {
      %214 = vector.shape_cast %209 : vector<8x32xf32> to vector<1x8x32xf32>
      %215 = vector.extract_strided_slice %214 {offsets = [0, 0, 0], sizes = [1, 1, 32], strides = [1, 1, 1]} : vector<1x8x32xf32> to vector<1x1x32xf32>
      %216 = vector.shape_cast %215 : vector<1x1x32xf32> to vector<1x32xf32>
      %c0_81 = arith.constant 0 : index
      %c0_82 = arith.constant 0 : index
      %217 = vector.load %arg10[%c0_81, %c0_82] : memref<2x32xf32, #tpu.memory_space<vmem>>, vector<1x32xf32>
      %c1_83 = arith.constant 1 : index
      %c0_84 = arith.constant 0 : index
      %218 = vector.load %arg10[%c1_83, %c0_84] : memref<2x32xf32, #tpu.memory_space<vmem>>, vector<1x32xf32>
      %cst_85 = arith.constant dense<0.000000e+00> : vector<1xf32>
      %219 = vector.multi_reduction <add>, %216, %cst_85 [1] : vector<1x32xf32> to vector<1xf32>
      %220 = vector.shape_cast %219 : vector<1xf32> to vector<1x1xf32>
      %cst_86 = arith.constant 3.200000e+01 : f32
      %221 = vector.broadcast %cst_86 : f32 to vector<1x1xf32>
      %222 = arith.divf %220, %221 : vector<1x1xf32>
      %223 = vector.broadcast %222 : vector<1x1xf32> to vector<1x32xf32>
      %224 = arith.subf %216, %223 : vector<1x32xf32>
      %225 = arith.mulf %224, %224 : vector<1x32xf32>
      %cst_87 = arith.constant dense<0.000000e+00> : vector<1xf32>
      %226 = vector.multi_reduction <add>, %225, %cst_87 [1] : vector<1x32xf32> to vector<1xf32>
      %227 = vector.shape_cast %226 : vector<1xf32> to vector<1x1xf32>
      %cst_88 = arith.constant 3.200000e+01 : f32
      %228 = vector.broadcast %cst_88 : f32 to vector<1x1xf32>
      %229 = arith.divf %227, %228 : vector<1x1xf32>
      %230 = vector.broadcast %222 : vector<1x1xf32> to vector<1x32xf32>
      %231 = arith.subf %216, %230 : vector<1x32xf32>
      %cst_89 = arith.constant 9.99999974E-6 : f32
      %232 = vector.broadcast %cst_89 : f32 to vector<1x1xf32>
      %233 = arith.addf %229, %232 : vector<1x1xf32>
      %234 = math.rsqrt %233 : vector<1x1xf32>
      %235 = vector.broadcast %234 : vector<1x1xf32> to vector<1x32xf32>
      %236 = arith.mulf %231, %235 : vector<1x32xf32>
      %237 = arith.mulf %236, %217 : vector<1x32xf32>
      %238 = arith.addf %237, %218 : vector<1x32xf32>
      %239 = arith.truncf %238 : vector<1x32xf32> to vector<1x32xbf16>
      %c0_90 = arith.constant 0 : index
      %c0_91 = arith.constant 0 : index
      %240 = vector.load %arg11[%c0_90, %c0_91] : memref<32x128xbf16, #tpu.memory_space<vmem>>, vector<32x128xbf16>
      %cst_92 = arith.constant dense<0.000000e+00> : vector<1x128xf32>
      %241 = tpu.matmul %239, %240, %cst_92 {dimension_numbers = #tpu.dot_dimension_numbers<[1], [0], [0], [1], [0, 0, 1, 1], [], []>} : vector<1x32xbf16>, vector<32x128xbf16>, vector<1x128xf32> -> vector<1x128xf32>
      %c0_93 = arith.constant 0 : index
      %c0_94 = arith.constant 0 : index
      %242 = vector.load %arg12[%c0_93, %c0_94] : memref<1x128xf32, #tpu.memory_space<vmem>>, vector<1x128xf32>
      %243 = arith.addf %241, %242 : vector<1x128xf32>
      %c0_95 = arith.constant 0 : index
      %c0_96 = arith.constant 0 : index
      %c0_97 = arith.constant 0 : index
      %244 = vector.load %arg13[%c0_95, %c0_96, %c0_97] : memref<1x1x128xf32, #tpu.memory_space<vmem>>, vector<1x1x128xf32>
      %245 = vector.shape_cast %244 : vector<1x1x128xf32> to vector<1x128xf32>
      %246 = vector.shape_cast %243 : vector<1x128xf32> to vector<1x1x128xf32>
      tpu.vector_store %arg13[%c0_95, %c0_96, %c0_97], %246 {strides = array<i32>} : memref<1x1x128xf32, #tpu.memory_space<vmem>>, vector<1x1x128xf32>,
    } else {
    }
    return
  }
  func.func @transform_1(%arg0: i32, %arg1: i32) -> (i32, i32, i32) {
    %c0_i32 = arith.constant 0 : i32
    %c0_i32_0 = arith.constant 0 : i32
    %c0_i32_1 = arith.constant 0 : i32
    return %arg1, %c0_i32, %c0_i32_0 : i32, i32, i32
  }
  func.func @transform_2(%arg0: i32, %arg1: i32) -> (i32, i32, i32) {
    %c0_i32 = arith.constant 0 : i32
    %c0_i32_0 = arith.constant 0 : i32
    %c0_i32_1 = arith.constant 0 : i32
    return %arg1, %c0_i32, %c0_i32_0 : i32, i32, i32
  }
  func.func @transform_3(%arg0: i32, %arg1: i32) -> (i32, i32, i32) {
    %c0_i32 = arith.constant 0 : i32
    %c0_i32_0 = arith.constant 0 : i32
    %c0_i32_1 = arith.constant 0 : i32
    return %arg1, %c0_i32, %c0_i32_0 : i32, i32, i32
  }
  func.func @transform_4(%arg0: i32, %arg1: i32) -> (i32, i32, i32) {
    %c0_i32 = arith.constant 0 : i32
    %c0_i32_0 = arith.constant 0 : i32
    %c0_i32_1 = arith.constant 0 : i32
    return %arg1, %c0_i32, %c0_i32_0 : i32, i32, i32
  }
  func.func @transform_5(%arg0: i32, %arg1: i32) -> (i32, i32, i32) {
    %c0_i32 = arith.constant 0 : i32
    %c0_i32_0 = arith.constant 0 : i32
    %c0_i32_1 = arith.constant 0 : i32
    return %arg1, %c0_i32, %c0_i32_0 : i32, i32, i32
  }
  func.func @transform_6(%arg0: i32, %arg1: i32) -> (i32, i32, i32) {
    %c0_i32 = arith.constant 0 : i32
    %c0_i32_0 = arith.constant 0 : i32
    %c0_i32_1 = arith.constant 0 : i32
    return %arg1, %c0_i32, %c0_i32_0 : i32, i32, i32
  }
  func.func @transform_7(%arg0: i32, %arg1: i32) -> (i32, i32, i32) {
    %c0_i32 = arith.constant 0 : i32
    %c0_i32_0 = arith.constant 0 : i32
    %c0_i32_1 = arith.constant 0 : i32
    return %arg1, %c0_i32, %c0_i32_0 : i32, i32, i32
  }
  func.func @transform_8(%arg0: i32, %arg1: i32) -> (i32, i32) {
    %c0_i32 = arith.constant 0 : i32
    %c0_i32_0 = arith.constant 0 : i32
    %c0_i32_1 = arith.constant 0 : i32
    return %c0_i32, %c0_i32_0 : i32, i32
  }
  func.func @transform_9(%arg0: i32, %arg1: i32) -> (i32, i32) {
    %c0_i32 = arith.constant 0 : i32
    %c0_i32_0 = arith.constant 0 : i32
    %c0_i32_1 = arith.constant 0 : i32
    return %c0_i32, %c0_i32_0 : i32, i32
  }
  func.func @transform_10(%arg0: i32, %arg1: i32) -> (i32, i32) {
    %c0_i32 = arith.constant 0 : i32
    %c0_i32_0 = arith.constant 0 : i32
    %c0_i32_1 = arith.constant 0 : i32
    return %c0_i32, %c0_i32_0 : i32, i32
  }
  func.func @transform_11(%arg0: i32, %arg1: i32) -> (i32, i32, i32) {
    %c0_i32 = arith.constant 0 : i32
    %c0_i32_0 = arith.constant 0 : i32
    %c0_i32_1 = arith.constant 0 : i32
    return %arg0, %c0_i32, %c0_i32_0 : i32, i32, i32
  }
}

</mosaic_0001>

<llo_original>
// kernel: tpu_custom_call.1
$region0: #{tpu_custom_call.1}
  #allocation0 [shape = 'u32[]', space=smem, size = 0x4, offset = 0x4, fixed_abs, tag = 'smem constant byte address 0x4 - core index']
  #allocation1 [shape = 'u32[144,128]{1,0:T(1,128)}', space=vmem, size = 0x12000, scoped, tag = 'internal scratch']
  #allocation2 [shape = 'f32[8,32]{1,0:T(8,128)}', space=vmem, size = 0x1000, scoped, tag = 'scratch operand']
  #allocation3 [shape = 'f32[8,32]{1,0:T(8,128)}', space=vmem, size = 0x1000, scoped, tag = 'scratch operand']
  #allocation4 [shape = 's32[1]{0}', space=sflag, size = 0x4, scoped, tag = 'scratch operand']
  #allocation7 [shape = 's32[]', space=sflag, size = 0x4, offset = 0, fixed_abs, tag = 'sflag constant byte address 0x0 - dummy sync flag']
  %s0 = inlined_call_operand.vmem [shape: f32[16,32], index: 0, kind: input, shape index: {}]
  %s1 = inlined_call_operand.vmem [shape: bf16[2,32,96], index: 1, kind: input, shape index: {}]
  %s2 = inlined_call_operand.vmem [shape: f32[2,1,96], index: 2, kind: input, shape index: {}]
  %s3 = inlined_call_operand.vmem [shape: bf16[2,32,32], index: 3, kind: input, shape index: {}]
  %s4 = inlined_call_operand.vmem [shape: f32[2,6,32], index: 4, kind: input, shape index: {}]
  %s5 = inlined_call_operand.vmem [shape: bf16[2,32,128], index: 5, kind: input, shape index: {}]
  %s6 = inlined_call_operand.vmem [shape: f32[2,1,128], index: 6, kind: input, shape index: {}]
  %s7 = inlined_call_operand.vmem [shape: bf16[2,128,32], index: 7, kind: input, shape index: {}]
  %s8 = inlined_call_operand.vmem [shape: f32[2,32], index: 8, kind: input, shape index: {}]
  %s9 = inlined_call_operand.vmem [shape: bf16[32,128], index: 9, kind: input, shape index: {}]
  %s10 = inlined_call_operand.vmem [shape: f32[1,128], index: 10, kind: input, shape index: {}]
  %s11 = inlined_call_operand.hbm [shape: f32[2,1,128], index: 11, kind: output, shape index: {}]
  %s12 = sld [smem:[#allocation0]]
  $region115: #{tpu_custom_call.1} parent=0
    _
  %s14 = ssub.s32 1, %s12
  %s15 = scalar_select 0, %s14, %s12
  $region1: #{tpu_custom_call.1} parent=0
    #allocation5 [shape = 'u8[1024]{0}', space=vmem, size = 0x400, scoped, tag = 'output window, operand 0']
    #allocation6 [shape = 's32[2]{0}', space=sflag, size = 0x8, scoped, tag = 'scoped memory for tpu_custom_call.1']
    %16 = vsyncpa [#allocation6], 0
    %s17 = scalar_lea.sflag [#allocation6], 1
    %18 = vsyncpa %s17, 0
    loop: start=0, step=1, limit=6
    $region2: #{tpu_custom_call.1} parent=1 // loop_pre_header
      _
    $region3: #{tpu_custom_call.1} parent=1 // loop_header
      %s20 = sphi 0, %s24
      %p21 = scmp.ge.s32.totalorder %s20, 6
      %s27 = sphi 0, %s39
      %s28 = sphi 0, %s35
      %s29 = sphi 0, %s27
      %s30 = sphi 0, %s28
      %s31 = sphi 0, %s29
      %s32 = sphi 0, %s30
      %s42 = sphi 0, %s44
      %s45 = sphi 0, %s42
      %s46 = sphi 0, %s45
      %s62 = sphi 0, %s46
      %s68 = sphi 0, %s70
      %s71 = sphi 0, %s68
      %s72 = sphi 0, %s71
      %s88 = sphi 0, %s72
      %s94 = sphi 0, %s96
      %s97 = sphi 0, %s94
      %s98 = sphi 0, %s97
      %s114 = sphi 0, %s98
      %s120 = sphi 0, %s122
      %s123 = sphi 0, %s120
      %s124 = sphi 0, %s123
      %s140 = sphi 0, %s124
      %s146 = sphi 0, %s148
      %s149 = sphi 0, %s146
      %s150 = sphi 0, %s149
      %s166 = sphi 0, %s150
      %s172 = sphi 0, %s174
      %s175 = sphi 0, %s172
      %s176 = sphi 0, %s175
      %s192 = sphi 0, %s176
      %s198 = sphi 0, %s200
      %s201 = sphi 0, %s198
      %s202 = sphi 0, %s201
      %s218 = sphi 0, %s202
      %s222 = sphi 0, %s222
      %s224 = sphi 0, %s222
      %s225 = sphi 0, %s224
      %s239 = sphi 0, %s225
      %s243 = sphi 0, %s243
      %s245 = sphi 0, %s243
      %s246 = sphi 0, %s245
      %s260 = sphi 0, %s246
      %s264 = sphi 0, %s264
      %s266 = sphi 0, %s264
      %s267 = sphi 0, %s266
      %s281 = sphi 0, %s267
      %s287 = sphi 0, %s289
      %s290 = sphi 0, %s287
      %s291 = sphi 0, %s290
      %s307 = sphi 0, %s291
    $region4: #{tpu_custom_call.1} parent=1 // loop_header_branch
      %23 = sbr.rel (%p21) target = $region8
    $region5: #{tpu_custom_call.1} parent=1 // loop_body
      %s25 = ssub.s32 %s20, 1
      %s26 = ssub.s32 %s20, 2
      %s33 = sadd.s32 1, %s28
      %p34 = scmp.ge.s32.totalorder %s33, 2
      %s35 = scalar_select %p34, 0, %s33
      %s36 = sadd.s32 1, %s27
      %s37 = scalar_select %p34, %s36, %s27
      %p38 = scmp.ge.s32.totalorder %s37, 2
      %s39 = scalar_select %p38, 0, %s37
      %s40 = ssub.s32 %s28, %s35
      %p41 = scmp.eq.s32.totalorder %s40, 0
      %s43 = sadd.s32 %s42, 1
      %s44 = scalar_select %p41, %s42, %s43
      %p47 = pneg %p41
      %p48 = scmp.eq.s32.totalorder %s20, 3
      %p49 = por %p47, %p48
      %p50 = scmp.ne.s32.totalorder %s42, %s45
      %p51 = scmp.eq.s32.totalorder %s20, 0
      %p52 = por %p50, %p51
      %p53 = scmp.ne.s32.totalorder %s42, %s45
      %p54 = scmp.eq.s32.totalorder %s25, 3
      %p55 = por %p53, %p54
      %p56 = scmp.ne.s32.totalorder %s45, %s46
      %p57 = scmp.eq.s32.totalorder %s25, 0
      %p58 = por %p56, %p57
      %p59 = scmp.ne.s32.totalorder %s45, %s46
      %p60 = scmp.eq.s32.totalorder %s26, 3
      %p61 = por %p59, %p60
      %p63 = scmp.ne.s32.totalorder %s46, %s62
      %p64 = scmp.eq.s32.totalorder %s26, 0
      %p65 = por %p63, %p64
      %s66 = ssub.s32 %s28, %s35
      %p67 = scmp.eq.s32.totalorder %s66, 0
      %s69 = sadd.s32 %s68, 1
      %s70 = scalar_select %p67, %s68, %s69
      %p73 = pneg %p67
      %p74 = scmp.eq.s32.totalorder %s20, 3
      %p75 = por %p73, %p74
      %p76 = scmp.ne.s32.totalorder %s68, %s71
      %p77 = scmp.eq.s32.totalorder %s20, 0
      %p78 = por %p76, %p77
      %p79 = scmp.ne.s32.totalorder %s68, %s71
      %p80 = scmp.eq.s32.totalorder %s25, 3
      %p81 = por %p79, %p80
      %p82 = scmp.ne.s32.totalorder %s71, %s72
      %p83 = scmp.eq.s32.totalorder %s25, 0
      %p84 = por %p82, %p83
      %p85 = scmp.ne.s32.totalorder %s71, %s72
      %p86 = scmp.eq.s32.totalorder %s26, 3
      %p87 = por %p85, %p86
      %p89 = scmp.ne.s32.totalorder %s72, %s88
      %p90 = scmp.eq.s32.totalorder %s26, 0
      %p91 = por %p89, %p90
      %s92 = ssub.s32 %s28, %s35
      %p93 = scmp.eq.s32.totalorder %s92, 0
      %s95 = sadd.s32 %s94, 1
      %s96 = scalar_select %p93, %s94, %s95
      %p99 = pneg %p93
      %p100 = scmp.eq.s32.totalorder %s20, 3
      %p101 = por %p99, %p100
      %p102 = scmp.ne.s32.totalorder %s94, %s97
      %p103 = scmp.eq.s32.totalorder %s20, 0
      %p104 = por %p102, %p103
      %p105 = scmp.ne.s32.totalorder %s94, %s97
      %p106 = scmp.eq.s32.totalorder %s25, 3
      %p107 = por %p105, %p106
      %p108 = scmp.ne.s32.totalorder %s97, %s98
      %p109 = scmp.eq.s32.totalorder %s25, 0
      %p110 = por %p108, %p109
      %p111 = scmp.ne.s32.totalorder %s97, %s98
      %p112 = scmp.eq.s32.totalorder %s26, 3
      %p113 = por %p111, %p112
      %p115 = scmp.ne.s32.totalorder %s98, %s114
      %p116 = scmp.eq.s32.totalorder %s26, 0
      %p117 = por %p115, %p116
      %s118 = ssub.s32 %s28, %s35
      %p119 = scmp.eq.s32.totalorder %s118, 0
      %s121 = sadd.s32 %s120, 1
      %s122 = scalar_select %p119, %s120, %s121
      %p125 = pneg %p119
      %p126 = scmp.eq.s32.totalorder %s20, 3
      %p127 = por %p125, %p126
      %p128 = scmp.ne.s32.totalorder %s120, %s123
      %p129 = scmp.eq.s32.totalorder %s20, 0
      %p130 = por %p128, %p129
      %p131 = scmp.ne.s32.totalorder %s120, %s123
      %p132 = scmp.eq.s32.totalorder %s25, 3
      %p133 = por %p131, %p132
      %p134 = scmp.ne.s32.totalorder %s123, %s124
      %p135 = scmp.eq.s32.totalorder %s25, 0
      %p136 = por %p134, %p135
      %p137 = scmp.ne.s32.totalorder %s123, %s124
      %p138 = scmp.eq.s32.totalorder %s26, 3
      %p139 = por %p137, %p138
      %p141 = scmp.ne.s32.totalorder %s124, %s140
      %p142 = scmp.eq.s32.totalorder %s26, 0
      %p143 = por %p141, %p142
      %s144 = ssub.s32 %s28, %s35
      %p145 = scmp.eq.s32.totalorder %s144, 0
      %s147 = sadd.s32 %s146, 1
      %s148 = scalar_select %p145, %s146, %s147
      %p151 = pneg %p145
      %p152 = scmp.eq.s32.totalorder %s20, 3
      %p153 = por %p151, %p152
      %p154 = scmp.ne.s32.totalorder %s146, %s149
      %p155 = scmp.eq.s32.totalorder %s20, 0
      %p156 = por %p154, %p155
      %p157 = scmp.ne.s32.totalorder %s146, %s149
      %p158 = scmp.eq.s32.totalorder %s25, 3
      %p159 = por %p157, %p158
      %p160 = scmp.ne.s32.totalorder %s149, %s150
      %p161 = scmp.eq.s32.totalorder %s25, 0
      %p162 = por %p160, %p161
      %p163 = scmp.ne.s32.totalorder %s149, %s150
      %p164 = scmp.eq.s32.totalorder %s26, 3
      %p165 = por %p163, %p164
      %p167 = scmp.ne.s32.totalorder %s150, %s166
      %p168 = scmp.eq.s32.totalorder %s26, 0
      %p169 = por %p167, %p168
      %s170 = ssub.s32 %s28, %s35
      %p171 = scmp.eq.s32.totalorder %s170, 0
      %s173 = sadd.s32 %s172, 1
      %s174 = scalar_select %p171, %s172, %s173
      %p177 = pneg %p171
      %p178 = scmp.eq.s32.totalorder %s20, 3
      %p179 = por %p177, %p178
      %p180 = scmp.ne.s32.totalorder %s172, %s175
      %p181 = scmp.eq.s32.totalorder %s20, 0
      %p182 = por %p180, %p181
      %p183 = scmp.ne.s32.totalorder %s172, %s175
      %p184 = scmp.eq.s32.totalorder %s25, 3
      %p185 = por %p183, %p184
      %p186 = scmp.ne.s32.totalorder %s175, %s176
      %p187 = scmp.eq.s32.totalorder %s25, 0
      %p188 = por %p186, %p187
      %p189 = scmp.ne.s32.totalorder %s175, %s176
      %p190 = scmp.eq.s32.totalorder %s26, 3
      %p191 = por %p189, %p190
      %p193 = scmp.ne.s32.totalorder %s176, %s192
      %p194 = scmp.eq.s32.totalorder %s26, 0
      %p195 = por %p193, %p194
      %s196 = ssub.s32 %s28, %s35
      %p197 = scmp.eq.s32.totalorder %s196, 0
      %s199 = sadd.s32 %s198, 1
      %s200 = scalar_select %p197, %s198, %s199
      %p203 = pneg %p197
      %p204 = scmp.eq.s32.totalorder %s20, 3
      %p205 = por %p203, %p204
      %p206 = scmp.ne.s32.totalorder %s198, %s201
      %p207 = scmp.eq.s32.totalorder %s20, 0
      %p208 = por %p206, %p207
      %p209 = scmp.ne.s32.totalorder %s198, %s201
      %p210 = scmp.eq.s32.totalorder %s25, 3
      %p211 = por %p209, %p210
      %p212 = scmp.ne.s32.totalorder %s201, %s202
      %p213 = scmp.eq.s32.totalorder %s25, 0
      %p214 = por %p212, %p213
      %p215 = scmp.ne.s32.totalorder %s201, %s202
      %p216 = scmp.eq.s32.totalorder %s26, 3
      %p217 = por %p215, %p216
      %p219 = scmp.ne.s32.totalorder %s202, %s218
      %p220 = scmp.eq.s32.totalorder %s26, 0
      %p221 = por %p219, %p220
      %s223 = sadd.s32 %s222, 1
      %p226 = scmp.eq.s32.totalorder %s20, 3
      %p227 = scmp.ne.s32.totalorder %s222, %s224
      %p228 = scmp.eq.s32.totalorder %s20, 0
      %p229 = por %p227, %p228
      %p230 = scmp.ne.s32.totalorder %s222, %s224
      %p231 = scmp.eq.s32.totalorder %s25, 3
      %p232 = por %p230, %p231
      %p233 = scmp.ne.s32.totalorder %s224, %s225
      %p234 = scmp.eq.s32.totalorder %s25, 0
      %p235 = por %p233, %p234
      %p236 = scmp.ne.s32.totalorder %s224, %s225
      %p237 = scmp.eq.s32.totalorder %s26, 3
      %p238 = por %p236, %p237
      %p240 = scmp.ne.s32.totalorder %s225, %s239
      %p241 = scmp.eq.s32.totalorder %s26, 0
      %p242 = por %p240, %p241
      %s244 = sadd.s32 %s243, 1
      %p247 = scmp.eq.s32.totalorder %s20, 3
      %p248 = scmp.ne.s32.totalorder %s243, %s245
      %p249 = scmp.eq.s32.totalorder %s20, 0
      %p250 = por %p248, %p249
      %p251 = scmp.ne.s32.totalorder %s243, %s245
      %p252 = scmp.eq.s32.totalorder %s25, 3
      %p253 = por %p251, %p252
      %p254 = scmp.ne.s32.totalorder %s245, %s246
      %p255 = scmp.eq.s32.totalorder %s25, 0
      %p256 = por %p254, %p255
      %p257 = scmp.ne.s32.totalorder %s245, %s246
      %p258 = scmp.eq.s32.totalorder %s26, 3
      %p259 = por %p257, %p258
      %p261 = scmp.ne.s32.totalorder %s246, %s260
      %p262 = scmp.eq.s32.totalorder %s26, 0
      %p263 = por %p261, %p262
      %s265 = sadd.s32 %s264, 1
      %p268 = scmp.eq.s32.totalorder %s20, 3
      %p269 = scmp.ne.s32.totalorder %s264, %s266
      %p270 = scmp.eq.s32.totalorder %s20, 0
      %p271 = por %p269, %p270
      %p272 = scmp.ne.s32.totalorder %s264, %s266
      %p273 = scmp.eq.s32.totalorder %s25, 3
      %p274 = por %p272, %p273
      %p275 = scmp.ne.s32.totalorder %s266, %s267
      %p276 = scmp.eq.s32.totalorder %s25, 0
      %p277 = por %p275, %p276
      %p278 = scmp.ne.s32.totalorder %s266, %s267
      %p279 = scmp.eq.s32.totalorder %s26, 3
      %p280 = por %p278, %p279
      %p282 = scmp.ne.s32.totalorder %s267, %s281
      %p283 = scmp.eq.s32.totalorder %s26, 0
      %p284 = por %p282, %p283
      %s285 = ssub.s32 %s27, %s39
      %p286 = scmp.eq.s32.totalorder %s285, 0
      %s288 = sadd.s32 %s287, 1
      %s289 = scalar_select %p286, %s287, %s288
      %p292 = pneg %p286
      %p293 = scmp.eq.s32.totalorder %s20, 3
      %p294 = por %p292, %p293
      %p295 = scmp.ne.s32.totalorder %s287, %s290
      %p296 = scmp.eq.s32.totalorder %s20, 0
      %p297 = por %p295, %p296
      %p298 = scmp.ne.s32.totalorder %s287, %s290
      %p299 = scmp.eq.s32.totalorder %s25, 3
      %p300 = por %p298, %p299
      %p301 = scmp.ne.s32.totalorder %s290, %s291
      %p302 = scmp.eq.s32.totalorder %s25, 0
      %p303 = por %p301, %p302
      %p304 = scmp.ne.s32.totalorder %s290, %s291
      %p305 = scmp.eq.s32.totalorder %s26, 3
      %p306 = por %p304, %p305
      %p308 = scmp.ne.s32.totalorder %s291, %s307
      %p309 = scmp.eq.s32.totalorder %s26, 0
      %p310 = por %p308, %p309
      %p311 = scmp.le.s32.totalorder 1, %s20
      %p312 = scmp.lt.s32.totalorder %s20, 5
      %p313 = pnand %p311, %p312
      %p314 = pneg %p313
      // Predicated region
      $region9: #{tpu_custom_call.1} parent=5 // pred_check
        _
      $region10: #{tpu_custom_call.1} parent=5 // pred_check_branch
        %316 = sbr.rel (%p313) target = $region12
      $region11: #{tpu_custom_call.1} parent=5 // pred_region
        %s317 = ssub.s32 %s20, 1
        // Predicated region
        $region13: #{tpu_custom_call.1} parent=11 // pred_check
          %p318 = pneg %p235
        $region14: #{tpu_custom_call.1} parent=11 // pred_check_branch
          %320 = sbr.rel (%p318) target = $region16
        $region15: #{tpu_custom_call.1} parent=11 // pred_region
          _
        $region16: #{tpu_custom_call.1} parent=11 // pred_fallthru
          _
        // Predicated region
        $region17: #{tpu_custom_call.1} parent=11 // pred_check
          %p321 = pneg %p256
        $region18: #{tpu_custom_call.1} parent=11 // pred_check_branch
          %323 = sbr.rel (%p321) target = $region20
        $region19: #{tpu_custom_call.1} parent=11 // pred_region
          _
        $region20: #{tpu_custom_call.1} parent=11 // pred_fallthru
          _
        // Predicated region
        $region21: #{tpu_custom_call.1} parent=11 // pred_check
          %p324 = pneg %p277
        $region22: #{tpu_custom_call.1} parent=11 // pred_check_branch
          %326 = sbr.rel (%p324) target = $region24
        $region23: #{tpu_custom_call.1} parent=11 // pred_region
          _
        $region24: #{tpu_custom_call.1} parent=11 // pred_fallthru
          _
      $region12: #{tpu_custom_call.1} parent=5 // pred_fallthru
        _
      %p327 = scmp.lt.s32.totalorder %s20, 4
      // Predicated region
      $region25: #{tpu_custom_call.1} parent=5 // pred_check
        %p328 = pneg %p327
      $region26: #{tpu_custom_call.1} parent=5 // pred_check_branch
        %330 = sbr.rel (%p328) target = $region28
      $region27: #{tpu_custom_call.1} parent=5 // pred_region
        // Predicated region
        $region29: #{tpu_custom_call.1} parent=27 // pred_check
          %p331 = pneg %p52
        $region30: #{tpu_custom_call.1} parent=27 // pred_check_branch
          %333 = sbr.rel (%p331) target = $region32
        $region31: #{tpu_custom_call.1} parent=27 // pred_region
          %p334 = scmp.lt.s32.totalorder %s28, 1
          %s335 = scalar_select %p334, %s28, 1
          %s336 = smul.addr %s335, 4
          %s337 = smul.addr %s336, 4
          %s338 = scalar_lea.vmem %s1, %s337
        $region32: #{tpu_custom_call.1} parent=27 // pred_fallthru
          _
        // Predicated region
        $region33: #{tpu_custom_call.1} parent=27 // pred_check
          %p339 = pneg %p78
        $region34: #{tpu_custom_call.1} parent=27 // pred_check_branch
          %341 = sbr.rel (%p339) target = $region36
        $region35: #{tpu_custom_call.1} parent=27 // pred_region
          %p342 = scmp.lt.s32.totalorder %s28, 1
          %s343 = scalar_select %p342, %s28, 1
          %s344 = scalar_lea.vmem %s2, %s343
        $region36: #{tpu_custom_call.1} parent=27 // pred_fallthru
          _
        // Predicated region
        $region37: #{tpu_custom_call.1} parent=27 // pred_check
          %p345 = pneg %p104
        $region38: #{tpu_custom_call.1} parent=27 // pred_check_branch
          %347 = sbr.rel (%p345) target = $region40
        $region39: #{tpu_custom_call.1} parent=27 // pred_region
          %p348 = scmp.lt.s32.totalorder %s28, 1
          %s349 = scalar_select %p348, %s28, 1
          %s350 = smul.addr %s349, 4
          %s351 = smul.addr %s350, 4
          %s352 = scalar_lea.vmem %s3, %s351
        $region40: #{tpu_custom_call.1} parent=27 // pred_fallthru
          _
        // Predicated region
        $region41: #{tpu_custom_call.1} parent=27 // pred_check
          %p353 = pneg %p130
        $region42: #{tpu_custom_call.1} parent=27 // pred_check_branch
          %355 = sbr.rel (%p353) target = $region44
        $region43: #{tpu_custom_call.1} parent=27 // pred_region
          %p356 = scmp.lt.s32.totalorder %s28, 1
          %s357 = scalar_select %p356, %s28, 1
          %s358 = smul.addr %s357, 8
          %s359 = scalar_lea.vmem %s4, %s358
        $region44: #{tpu_custom_call.1} parent=27 // pred_fallthru
          _
        // Predicated region
        $region45: #{tpu_custom_call.1} parent=27 // pred_check
          %p360 = pneg %p156
        $region46: #{tpu_custom_call.1} parent=27 // pred_check_branch
          %362 = sbr.rel (%p360) target = $region48
        $region47: #{tpu_custom_call.1} parent=27 // pred_region
          %p363 = scmp.lt.s32.totalorder %s28, 1
          %s364 = scalar_select %p363, %s28, 1
          %s365 = smul.addr %s364, 4
          %s366 = smul.addr %s365, 4
          %s367 = scalar_lea.vmem %s5, %s366
        $region48: #{tpu_custom_call.1} parent=27 // pred_fallthru
          _
        // Predicated region
        $region49: #{tpu_custom_call.1} parent=27 // pred_check
          %p368 = pneg %p182
        $region50: #{tpu_custom_call.1} parent=27 // pred_check_branch
          %370 = sbr.rel (%p368) target = $region52
        $region51: #{tpu_custom_call.1} parent=27 // pred_region
          %p371 = scmp.lt.s32.totalorder %s28, 1
          %s372 = scalar_select %p371, %s28, 1
          %s373 = scalar_lea.vmem %s6, %s372
        $region52: #{tpu_custom_call.1} parent=27 // pred_fallthru
          _
        // Predicated region
        $region53: #{tpu_custom_call.1} parent=27 // pred_check
          %p374 = pneg %p208
        $region54: #{tpu_custom_call.1} parent=27 // pred_check_branch
          %376 = sbr.rel (%p374) target = $region56
        $region55: #{tpu_custom_call.1} parent=27 // pred_region
          %p377 = scmp.lt.s32.totalorder %s28, 1
          %s378 = scalar_select %p377, %s28, 1
          %s379 = smul.addr %s378, 16
          %s380 = smul.addr %s379, 4
          %s381 = scalar_lea.vmem %s7, %s380
        $region56: #{tpu_custom_call.1} parent=27 // pred_fallthru
          _
      $region28: #{tpu_custom_call.1} parent=5 // pred_fallthru
        _
      %p382 = scmp.le.s32.totalorder 1, %s20
      %p383 = scmp.lt.s32.totalorder %s20, 5
      %p384 = pnand %p382, %p383
      %p385 = pneg %p384
      // Predicated region
      $region57: #{tpu_custom_call.1} parent=5 // pred_check
        _
      $region58: #{tpu_custom_call.1} parent=5 // pred_check_branch
        %387 = sbr.rel (%p384) target = $region60
      $region59: #{tpu_custom_call.1} parent=5 // pred_region
        %s388 = ssub.s32 %s20, 1
        %p389 = scmp.lt.s32.totalorder %s30, 1
        %s390 = scalar_select %p389, %s30, 1
        %s391 = smul.addr %s390, 4
        %s392 = smul.addr %s391, 4
        %s393 = scalar_lea.vmem %s1, %s392
        %p394 = pneg %p58
        %p395 = pneg %p55
        %p396 = scmp.lt.s32.totalorder %s30, 1
        %s397 = scalar_select %p396, %s30, 1
        %s398 = scalar_lea.vmem %s2, %s397
        %p399 = pneg %p84
        %p400 = pneg %p81
        %p401 = scmp.lt.s32.totalorder %s30, 1
        %s402 = scalar_select %p401, %s30, 1
        %s403 = smul.addr %s402, 4
        %s404 = smul.addr %s403, 4
        %s405 = scalar_lea.vmem %s3, %s404
        %p406 = pneg %p110
        %p407 = pneg %p107
        %p408 = scmp.lt.s32.totalorder %s30, 1
        %s409 = scalar_select %p408, %s30, 1
        %s410 = smul.addr %s409, 8
        %s411 = scalar_lea.vmem %s4, %s410
        %p412 = pneg %p136
        %p413 = pneg %p133
        %p414 = scmp.lt.s32.totalorder %s30, 1
        %s415 = scalar_select %p414, %s30, 1
        %s416 = smul.addr %s415, 4
        %s417 = smul.addr %s416, 4
        %s418 = scalar_lea.vmem %s5, %s417
        %p419 = pneg %p162
        %p420 = pneg %p159
        %p421 = scmp.lt.s32.totalorder %s30, 1
        %s422 = scalar_select %p421, %s30, 1
        %s423 = scalar_lea.vmem %s6, %s422
        %p424 = pneg %p188
        %p425 = pneg %p185
        %p426 = scmp.lt.s32.totalorder %s30, 1
        %s427 = scalar_select %p426, %s30, 1
        %s428 = smul.addr %s427, 16
        %s429 = smul.addr %s428, 4
        %s430 = scalar_lea.vmem %s7, %s429
        %p431 = pneg %p214
        %p432 = pneg %p211
        %p433 = pneg %p235
        %p434 = pneg %p232
        %p435 = pneg %p256
        %p436 = pneg %p253
        %p437 = pneg %p277
        %p438 = pneg %p274
        %p439 = pneg %p303
        %p440 = pneg %p300
        %s441 = sand.u32 %s290, 1
        %s442 = scalar_lea.sflag [#allocation6], %s441
        %s443 = sand.u32 %s290, 1
        %s444 = scalar_lea.vmem [#allocation5], %s443
        %p445 = scmp.lt.s32.totalorder %s30, 1
        %s446 = scalar_select %p445, %s30, 1
        %s447 = smul.addr %s446, 4
        %s448 = smul.addr %s447, 4
        %s449 = scalar_lea.vmem %s1, %s448
        %p450 = scmp.lt.s32.totalorder %s30, 1
        %s451 = scalar_select %p450, %s30, 1
        %s452 = scalar_lea.vmem %s2, %s451
        %p453 = scmp.lt.s32.totalorder %s30, 1
        %s454 = scalar_select %p453, %s30, 1
        %s455 = smul.addr %s454, 4
        %s456 = smul.addr %s455, 4
        %s457 = scalar_lea.vmem %s3, %s456
        %p458 = scmp.lt.s32.totalorder %s30, 1
        %s459 = scalar_select %p458, %s30, 1
        %s460 = smul.addr %s459, 8
        %s461 = scalar_lea.vmem %s4, %s460
        %p462 = scmp.lt.s32.totalorder %s30, 1
        %s463 = scalar_select %p462, %s30, 1
        %s464 = smul.addr %s463, 4
        %s465 = smul.addr %s464, 4
        %s466 = scalar_lea.vmem %s5, %s465
        %p467 = scmp.lt.s32.totalorder %s30, 1
        %s468 = scalar_select %p467, %s30, 1
        %s469 = scalar_lea.vmem %s6, %s468
        %p470 = scmp.lt.s32.totalorder %s30, 1
        %s471 = scalar_select %p470, %s30, 1
        %s472 = smul.addr %s471, 16
        %s473 = smul.addr %s472, 4
        %s474 = scalar_lea.vmem %s7, %s473
        %p476 = scmp.eq.s32.totalorder %s30, 0
        // Predicated region
        $region61: #{tpu_custom_call.1} parent=59 // pred_check
          %p477 = pneg %p476
        $region62: #{tpu_custom_call.1} parent=59 // pred_check_branch
          %479 = sbr.rel (%p477) target = $region64
        $region63: #{tpu_custom_call.1} parent=59 // pred_region
          %s480 = smul.u32 %s29, 8
          %s481 = scalar_lea.vmem %s0, %s480
          %p483 = scmp.lt.u32.totalorder 8, 8
          %p484 = pneg %p483
          // Predicated region
          $region65: #{tpu_custom_call.1} parent=63 // pred_check
            _
          $region66: #{tpu_custom_call.1} parent=63 // pred_check_branch
            %486 = sbr.rel (%p483) target = $region68
          $region67: #{tpu_custom_call.1} parent=63 // pred_region
            %s502 = sand.u32 8, 7
            %p503 = scmp.eq.s32.totalorder %s502, 0
            // Predicated region
            $region80: #{tpu_custom_call.1} parent=67 // pred_check
              %p504 = pneg %p503
            $region81: #{tpu_custom_call.1} parent=67 // pred_check_branch
              %506 = sbr.rel (%p504) target = $region83
            $region82: #{tpu_custom_call.1} parent=67 // pred_region
              loop: start=0, step=1, limit=1
              $region84: #{tpu_custom_call.1} parent=82 // loop_pre_header
                _
              $region85: #{tpu_custom_call.1} parent=82 // loop_header
                %s508 = sphi 0, %s512
                %p509 = scmp.ge.s32.totalorder %s508, 1
                %s513 = sphi %s481, %s481
                %s514 = sphi [#allocation2], [#allocation2]
              $region86: #{tpu_custom_call.1} parent=82 // loop_header_branch
                %511 = sbr.rel (%p509) target = $region90
              $region87: #{tpu_custom_call.1} parent=82 // loop_body
                %v515 = vld [vmem:[%s513] sm:$0xff]
                %516 = vst [vmem:[%s514] sm:$0xff] %v515
              $region88: #{tpu_custom_call.1} parent=82 // loop_footer
                %s512 = sadd.s32 1, %s508
              $region89: #{tpu_custom_call.1} parent=82 // loop_footer_branch
                %507 = sbr.rel target = $region85
              $region90: #{tpu_custom_call.1} parent=82 // loop_exit
                _
            $region83: #{tpu_custom_call.1} parent=67 // pred_fallthru
              _
            %p517 = pneg %p503
            // Predicated region
            $region91: #{tpu_custom_call.1} parent=67 // pred_check
              _
            $region92: #{tpu_custom_call.1} parent=67 // pred_check_branch
              %519 = sbr.rel (%p503) target = $region94
            $region93: #{tpu_custom_call.1} parent=67 // pred_region
              %s520 = sand.u32 8, 7
            $region94: #{tpu_custom_call.1} parent=67 // pred_fallthru
              _
          $region68: #{tpu_custom_call.1} parent=63 // pred_fallthru
            _
          // Predicated region
          $region69: #{tpu_custom_call.1} parent=63 // pred_check
            %p487 = pneg %p483
          $region70: #{tpu_custom_call.1} parent=63 // pred_check_branch
            %489 = sbr.rel (%p487) target = $region72
          $region71: #{tpu_custom_call.1} parent=63 // pred_region
            %s490 = sshll.u32 1, 8
            %s491 = ssub.s32 %s490, 1
            loop: start=0, step=1, limit=1
            $region73: #{tpu_custom_call.1} parent=71 // loop_pre_header
              _
            $region74: #{tpu_custom_call.1} parent=71 // loop_header
              %s493 = sphi 0, %s497
              %p494 = scmp.ge.s32.totalorder %s493, 1
              %s498 = sphi %s481, %s481
              %s499 = sphi [#allocation2], [#allocation2]
            $region75: #{tpu_custom_call.1} parent=71 // loop_header_branch
              %496 = sbr.rel (%p494) target = $region79
            $region76: #{tpu_custom_call.1} parent=71 // loop_body
              %v500 = vld [vmem:[%s498] sm:%s491]
              %501 = vst [vmem:[%s499] sm:%s491] %v500
            $region77: #{tpu_custom_call.1} parent=71 // loop_footer
              %s497 = sadd.s32 1, %s493
            $region78: #{tpu_custom_call.1} parent=71 // loop_footer_branch
              %492 = sbr.rel target = $region74
            $region79: #{tpu_custom_call.1} parent=71 // loop_exit
              _
          $region72: #{tpu_custom_call.1} parent=63 // pred_fallthru
            _
          // Predicated region
          $region95: #{tpu_custom_call.1} parent=63 // pred_check
            _
          $region96: #{tpu_custom_call.1} parent=63 // pred_check_branch
            %523 = sbr.rel (0) target = $region98
          $region97: #{tpu_custom_call.1} parent=63 // pred_region
            %524 = vsyncadd [#allocation4], 128
          $region98: #{tpu_custom_call.1} parent=63 // pred_fallthru
            _
          %s525 = smul.u32 8, 1
          %s526 = sshll.u32 %s525, 4
          %527 = dma.done [#allocation4], %s526
        $region64: #{tpu_custom_call.1} parent=59 // pred_fallthru
          _
        %v528 = vld [vmem:[#allocation2] sm:$0xff]
        %v529 = vpack.c.bf16 %v528, %v528
        %v530 = vld [vmem:[%s449] sm:$0xf]
        %v531 = vld [vmem:[%s449 + $0x4] sm:$0xf]
        %v532 = vld [vmem:[%s449 + $0x8] sm:$0xf]
        %v533 = vld [vmem:[%s449 + $0xc] sm:$0xf]
        %v534 = vld [vmem:[%s452] sm:$0x1]
        %v536 = vlaneseq
        %v537 = vshrl.u32 %v536, 7
        %v538 = vsub.s32 0, %v537
        %v539 = vrot.slane %v534, %v538
        %v545 = vunpack.c.l.b16 %v530
        %v546 = vunpack.c.l.b16 %v531
        %v547 = vunpack.c.l.b16 %v532
        %v548 = vunpack.c.l.b16 %v533
        %v549 = vpack.c.b16 %v546, %v545
        %v550 = vpack.c.b16 %v548, %v547
        %vm553 = vcmask 261120
        %v555 = vsel %vm553, %v529, 0
        %557 = vmatprep.subr.bf16.mxu0 0
        %558 = vmatpush1.bf16.msra.mxu0 0
        %559 = vmatprep.subr.bf16.mxu0 0
        %560 = vmatpush1.bf16.msra.mxu0 0
        %561 = vmatprep.subr.bf16.mxu0 0
        %562 = vmatpush1.bf16.msra.mxu0 0
        %563 = vmatprep.subr.bf16.mxu0 0
        %564 = vmatpush1.bf16.msra.mxu0 0
        %565 = vmatprep.subr.bf16.mxu0 0
        %566 = vmatpush1.bf16.msra.mxu0 0
        %567 = vmatprep.subr.bf16.mxu0 0
        %568 = vmatpush1.bf16.msra.mxu0 0
        %569 = vmatprep.subr.bf16.mxu0 0
        %570 = vmatpush1.bf16.msra.mxu0 %v550
        %571 = vmatprep.subr.bf16.mxu0 0
        %572 = vmatpush1.bf16.msra.mxu0 %v549
        %573 = vmatprep.subr.bf16.mxu0 0
        %574 = vmatpush2.bf16.msra.mxu0 0
        %575 = vmatprep.subr.bf16.mxu0 0
        %576 = vmatpush2.bf16.msra.mxu0 0
        %577 = vmatprep.subr.bf16.mxu0 0
        %578 = vmatpush2.bf16.msra.mxu0 0
        %579 = vmatprep.subr.bf16.mxu0 0
        %580 = vmatpush2.bf16.msra.mxu0 0
        %581 = vmatprep.subr.bf16.mxu0 0
        %582 = vmatpush2.bf16.msra.mxu0 0
        %583 = vmatprep.subr.bf16.mxu0 0
        %584 = vmatpush2.bf16.msra.mxu0 0
        %585 = vmatprep.subr.bf16.mxu0 0
        %586 = vmatpush2.bf16.msra.mxu0 0
        %587 = vmatprep.subr.bf16.mxu0 0
        %588 = vmatpush2.bf16.msra.mxu0 0
        %589 = vmatprep.mubr.bf16.mxu0 0
        %590 = vmatmul.mubr.bf16.gmra.mxu0 %v555
        %v591 = vpop.f32.mrf.mxu0
        %v592 = vadd.f32 %v539, %v591
        %v593 = vpop.f32.mrf.mxu0
        %v594 = vpop.f32.mrf.mxu0
        %v595 = vpop.f32.mrf.mxu0
        %596 = vdwg.mxu0
        %v597 = vpack.c.bf16 %v592, %v592
        %599 = vrot.lane.b32.xlu0 %v597, 96
        %v600 = vpop.permute.xlu0 %599
        %vm601 = vcmask 64512
        %v603 = vsel %vm601, %v597, 0
        %v606 = vsel %vm601, %v600, 0
        %608 = vmatprep.subr.bf16.mxu0 0
        %609 = vmatpush1.bf16.xpose.msra.mxu0 0
        %610 = vmatprep.subr.bf16.mxu0 0
        %611 = vmatpush1.bf16.xpose.msra.mxu0 0
        %612 = vmatprep.subr.bf16.mxu0 0
        %613 = vmatpush1.bf16.xpose.msra.mxu0 0
        %614 = vmatprep.subr.bf16.mxu0 0
        %615 = vmatpush1.bf16.xpose.msra.mxu0 0
        %616 = vmatprep.subr.bf16.mxu0 0
        %617 = vmatpush1.bf16.xpose.msra.mxu0 0
        %618 = vmatprep.subr.bf16.mxu0 0
        %619 = vmatpush1.bf16.xpose.msra.mxu0 0
        %620 = vmatprep.subr.bf16.mxu0 0
        %621 = vmatpush1.bf16.xpose.msra.mxu0 0
        %622 = vmatprep.subr.bf16.mxu0 0
        %623 = vmatpush1.bf16.xpose.msra.mxu0 %v606
        %624 = vmatprep.subr.bf16.mxu0 0
        %625 = vmatpush2.bf16.xpose.msra.mxu0 0
        %626 = vmatprep.subr.bf16.mxu0 0
        %627 = vmatpush2.bf16.xpose.msra.mxu0 0
        %628 = vmatprep.subr.bf16.mxu0 0
        %629 = vmatpush2.bf16.xpose.msra.mxu0 0
        %630 = vmatprep.subr.bf16.mxu0 0
        %631 = vmatpush2.bf16.xpose.msra.mxu0 0
        %632 = vmatprep.subr.bf16.mxu0 0
        %633 = vmatpush2.bf16.xpose.msra.mxu0 0
        %634 = vmatprep.subr.bf16.mxu0 0
        %635 = vmatpush2.bf16.xpose.msra.mxu0 0
        %636 = vmatprep.subr.bf16.mxu0 0
        %637 = vmatpush2.bf16.xpose.msra.mxu0 0
        %638 = vmatprep.subr.bf16.mxu0 0
        %639 = vmatpush2.bf16.xpose.msra.mxu0 0
        %640 = vmatprep.mubr.bf16.mxu0 0
        %641 = vmatmul.mubr.bf16.gmra.mxu0 %v603
        %v642 = vpop.f32.mrf.mxu0
        %v643 = vadd.f32 0.0, %v642
        %v644 = vpop.f32.mrf.mxu0
        %v645 = vpop.f32.mrf.mxu0
        %v646 = vpop.f32.mrf.mxu0
        %647 = vdwg.mxu0
        %v648 = vmul.f32 %v643, 0.35355338
        %v649 = vsel %vm601, %v648, -inf
        %650 = vmax.xlane.f32.xlu0 %v649
        %v651 = vpop.xlane.xlu0 %650
        %v652 = vsub.f32 %v648, %v651
        %v653 = vmul.f32 %v652, 1.442695
        %v654 = vpow.pop %v653
        %v655 = vsel %vm601, %v654, 0.0
        %656 = vadd.xlane.f32.xlu0 %v655
        %v657 = vpop.xlane.xlu0 %656
        %v658 = vrcp.pop %v657
        %v659 = vmul.f32 %v654, %v658
        %v660 = vpack.c.bf16 %v659, %v659
        %661 = vrot.lane.b32.xlu0 %v597, 64
        %v662 = vpop.permute.xlu0 %661
        %v664 = vsel %vm601, %v660, 0
        %vm666 = vcmask 1043456
        %v668 = vsel %vm666, %v662, 0
        %670 = vmatprep.subr.bf16.mxu0 0
        %671 = vmatpush1.bf16.msra.mxu0 0
        %672 = vmatprep.subr.bf16.mxu0 0
        %673 = vmatpush1.bf16.msra.mxu0 0
        %674 = vmatprep.subr.bf16.mxu0 0
        %675 = vmatpush1.bf16.msra.mxu0 0
        %676 = vmatprep.subr.bf16.mxu0 0
        %677 = vmatpush1.bf16.msra.mxu0 0
        %678 = vmatprep.subr.bf16.mxu0 0
        %679 = vmatpush1.bf16.msra.mxu0 0
        %680 = vmatprep.subr.bf16.mxu0 0
        %681 = vmatpush1.bf16.msra.mxu0 0
        %682 = vmatprep.subr.bf16.mxu0 0
        %683 = vmatpush1.bf16.msra.mxu0 0
        %684 = vmatprep.subr.bf16.mxu0 0
        %685 = vmatpush1.bf16.msra.mxu0 %v668
        %686 = vmatprep.subr.bf16.mxu0 0
        %687 = vmatpush2.bf16.msra.mxu0 0
        %688 = vmatprep.subr.bf16.mxu0 0
        %689 = vmatpush2.bf16.msra.mxu0 0
        %690 = vmatprep.subr.bf16.mxu0 0
        %691 = vmatpush2.bf16.msra.mxu0 0
        %692 = vmatprep.subr.bf16.mxu0 0
        %693 = vmatpush2.bf16.msra.mxu0 0
        %694 = vmatprep.subr.bf16.mxu0 0
        %695 = vmatpush2.bf16.msra.mxu0 0
        %696 = vmatprep.subr.bf16.mxu0 0
        %697 = vmatpush2.bf16.msra.mxu0 0
        %698 = vmatprep.subr.bf16.mxu0 0
        %699 = vmatpush2.bf16.msra.mxu0 0
        %700 = vmatprep.subr.bf16.mxu0 0
        %701 = vmatpush2.bf16.msra.mxu0 0
        %702 = vmatprep.mubr.bf16.mxu0 0
        %703 = vmatmul.mubr.bf16.gmra.mxu0 %v664
        %v704 = vpop.f32.mrf.mxu0
        %v705 = vadd.f32 0.0, %v704
        %v706 = vpop.f32.mrf.mxu0
        %v707 = vpop.f32.mrf.mxu0
        %v708 = vpop.f32.mrf.mxu0
        %709 = vdwg.mxu0
        %710 = vst.msk [vmem:[#allocation3] sm:$0xff] %vm601, %v705
        %711 = vrot.lane.b32.xlu0 %v597, 120
        %v712 = vpop.permute.xlu0 %711
        %713 = vrot.lane.b32.xlu0 %v597, 88
        %v714 = vpop.permute.xlu0 %713
        %v716 = vsel %vm601, %v712, 0
        %v719 = vsel %vm601, %v714, 0
        %721 = vmatprep.subr.bf16.mxu0 0
        %722 = vmatpush1.bf16.xpose.msra.mxu0 0
        %723 = vmatprep.subr.bf16.mxu0 0
        %724 = vmatpush1.bf16.xpose.msra.mxu0 0
        %725 = vmatprep.subr.bf16.mxu0 0
        %726 = vmatpush1.bf16.xpose.msra.mxu0 0
        %727 = vmatprep.subr.bf16.mxu0 0
        %728 = vmatpush1.bf16.xpose.msra.mxu0 0
        %729 = vmatprep.subr.bf16.mxu0 0
        %730 = vmatpush1.bf16.xpose.msra.mxu0 0
        %731 = vmatprep.subr.bf16.mxu0 0
        %732 = vmatpush1.bf16.xpose.msra.mxu0 0
        %733 = vmatprep.subr.bf16.mxu0 0
        %734 = vmatpush1.bf16.xpose.msra.mxu0 0
        %735 = vmatprep.subr.bf16.mxu0 0
        %736 = vmatpush1.bf16.xpose.msra.mxu0 %v719
        %737 = vmatprep.subr.bf16.mxu0 0
        %738 = vmatpush2.bf16.xpose.msra.mxu0 0
        %739 = vmatprep.subr.bf16.mxu0 0
        %740 = vmatpush2.bf16.xpose.msra.mxu0 0
        %741 = vmatprep.subr.bf16.mxu0 0
        %742 = vmatpush2.bf16.xpose.msra.mxu0 0
        %743 = vmatprep.subr.bf16.mxu0 0
        %744 = vmatpush2.bf16.xpose.msra.mxu0 0
        %745 = vmatprep.subr.bf16.mxu0 0
        %746 = vmatpush2.bf16.xpose.msra.mxu0 0
        %747 = vmatprep.subr.bf16.mxu0 0
        %748 = vmatpush2.bf16.xpose.msra.mxu0 0
        %749 = vmatprep.subr.bf16.mxu0 0
        %750 = vmatpush2.bf16.xpose.msra.mxu0 0
        %751 = vmatprep.subr.bf16.mxu0 0
        %752 = vmatpush2.bf16.xpose.msra.mxu0 0
        %753 = vmatprep.mubr.bf16.mxu0 0
        %754 = vmatmul.mubr.bf16.gmra.mxu0 %v716
        %v755 = vpop.f32.mrf.mxu0
        %v756 = vadd.f32 0.0, %v755
        %v757 = vpop.f32.mrf.mxu0
        %v758 = vpop.f32.mrf.mxu0
        %v759 = vpop.f32.mrf.mxu0
        %760 = vdwg.mxu0
        %v761 = vmul.f32 %v756, 0.35355338
        %v762 = vsel %vm601, %v761, -inf
        %763 = vmax.xlane.f32.xlu0 %v762
        %v764 = vpop.xlane.xlu0 %763
        %v765 = vsub.f32 %v761, %v764
        %v766 = vmul.f32 %v765, 1.442695
        %v767 = vpow.pop %v766
        %v768 = vsel %vm601, %v767, 0.0
        %769 = vadd.xlane.f32.xlu0 %v768
        %v770 = vpop.xlane.xlu0 %769
        %v771 = vrcp.pop %v770
        %v772 = vmul.f32 %v767, %v771
        %v773 = vpack.c.bf16 %v772, %v772
        %774 = vrot.lane.b32.xlu0 %v597, 56
        %v775 = vpop.permute.xlu0 %774
        %v777 = vsel %vm601, %v773, 0
        %v780 = vsel %vm666, %v775, 0
        %782 = vmatprep.subr.bf16.mxu0 0
        %783 = vmatpush1.bf16.msra.mxu0 0
        %784 = vmatprep.subr.bf16.mxu0 0
        %785 = vmatpush1.bf16.msra.mxu0 0
        %786 = vmatprep.subr.bf16.mxu0 0
        %787 = vmatpush1.bf16.msra.mxu0 0
        %788 = vmatprep.subr.bf16.mxu0 0
        %789 = vmatpush1.bf16.msra.mxu0 0
        %790 = vmatprep.subr.bf16.mxu0 0
        %791 = vmatpush1.bf16.msra.mxu0 0
        %792 = vmatprep.subr.bf16.mxu0 0
        %793 = vmatpush1.bf16.msra.mxu0 0
        %794 = vmatprep.subr.bf16.mxu0 0
        %795 = vmatpush1.bf16.msra.mxu0 0
        %796 = vmatprep.subr.bf16.mxu0 0
        %797 = vmatpush1.bf16.msra.mxu0 %v780
        %798 = vmatprep.subr.bf16.mxu0 0
        %799 = vmatpush2.bf16.msra.mxu0 0
        %800 = vmatprep.subr.bf16.mxu0 0
        %801 = vmatpush2.bf16.msra.mxu0 0
        %802 = vmatprep.subr.bf16.mxu0 0
        %803 = vmatpush2.bf16.msra.mxu0 0
        %804 = vmatprep.subr.bf16.mxu0 0
        %805 = vmatpush2.bf16.msra.mxu0 0
        %806 = vmatprep.subr.bf16.mxu0 0
        %807 = vmatpush2.bf16.msra.mxu0 0
        %808 = vmatprep.subr.bf16.mxu0 0
        %809 = vmatpush2.bf16.msra.mxu0 0
        %810 = vmatprep.subr.bf16.mxu0 0
        %811 = vmatpush2.bf16.msra.mxu0 0
        %812 = vmatprep.subr.bf16.mxu0 0
        %813 = vmatpush2.bf16.msra.mxu0 0
        %814 = vmatprep.mubr.bf16.mxu0 0
        %815 = vmatmul.mubr.bf16.gmra.mxu0 %v777
        %v816 = vpop.f32.mrf.mxu0
        %v817 = vadd.f32 0.0, %v816
        %v818 = vpop.f32.mrf.mxu0
        %v819 = vpop.f32.mrf.mxu0
        %v820 = vpop.f32.mrf.mxu0
        %821 = vdwg.mxu0
        %823 = vrot.lane.b32.xlu0 %v817, 8
        %v824 = vpop.permute.xlu0 %823
        %vm826 = vcmask 130112
        %827 = vst.msk [vmem:[#allocation3] sm:$0xff] %vm826, %v824
        %828 = vrot.lane.b32.xlu0 %v597, 112
        %v829 = vpop.permute.xlu0 %828
        %830 = vrot.lane.b32.xlu0 %v597, 80
        %v831 = vpop.permute.xlu0 %830
        %v833 = vsel %vm601, %v829, 0
        %v836 = vsel %vm601, %v831, 0
        %838 = vmatprep.subr.bf16.mxu0 0
        %839 = vmatpush1.bf16.xpose.msra.mxu0 0
        %840 = vmatprep.subr.bf16.mxu0 0
        %841 = vmatpush1.bf16.xpose.msra.mxu0 0
        %842 = vmatprep.subr.bf16.mxu0 0
        %843 = vmatpush1.bf16.xpose.msra.mxu0 0
        %844 = vmatprep.subr.bf16.mxu0 0
        %845 = vmatpush1.bf16.xpose.msra.mxu0 0
        %846 = vmatprep.subr.bf16.mxu0 0
        %847 = vmatpush1.bf16.xpose.msra.mxu0 0
        %848 = vmatprep.subr.bf16.mxu0 0
        %849 = vmatpush1.bf16.xpose.msra.mxu0 0
        %850 = vmatprep.subr.bf16.mxu0 0
        %851 = vmatpush1.bf16.xpose.msra.mxu0 0
        %852 = vmatprep.subr.bf16.mxu0 0
        %853 = vmatpush1.bf16.xpose.msra.mxu0 %v836
        %854 = vmatprep.subr.bf16.mxu0 0
        %855 = vmatpush2.bf16.xpose.msra.mxu0 0
        %856 = vmatprep.subr.bf16.mxu0 0
        %857 = vmatpush2.bf16.xpose.msra.mxu0 0
        %858 = vmatprep.subr.bf16.mxu0 0
        %859 = vmatpush2.bf16.xpose.msra.mxu0 0
        %860 = vmatprep.subr.bf16.mxu0 0
        %861 = vmatpush2.bf16.xpose.msra.mxu0 0
        %862 = vmatprep.subr.bf16.mxu0 0
        %863 = vmatpush2.bf16.xpose.msra.mxu0 0
        %864 = vmatprep.subr.bf16.mxu0 0
        %865 = vmatpush2.bf16.xpose.msra.mxu0 0
        %866 = vmatprep.subr.bf16.mxu0 0
        %867 = vmatpush2.bf16.xpose.msra.mxu0 0
        %868 = vmatprep.subr.bf16.mxu0 0
        %869 = vmatpush2.bf16.xpose.msra.mxu0 0
        %870 = vmatprep.mubr.bf16.mxu0 0
        %871 = vmatmul.mubr.bf16.gmra.mxu0 %v833
        %v872 = vpop.f32.mrf.mxu0
        %v873 = vadd.f32 0.0, %v872
        %v874 = vpop.f32.mrf.mxu0
        %v875 = vpop.f32.mrf.mxu0
        %v876 = vpop.f32.mrf.mxu0
        %877 = vdwg.mxu0
        %v878 = vmul.f32 %v873, 0.35355338
        %v879 = vsel %vm601, %v878, -inf
        %880 = vmax.xlane.f32.xlu0 %v879
        %v881 = vpop.xlane.xlu0 %880
        %v882 = vsub.f32 %v878, %v881
        %v883 = vmul.f32 %v882, 1.442695
        %v884 = vpow.pop %v883
        %v885 = vsel %vm601, %v884, 0.0
        %886 = vadd.xlane.f32.xlu0 %v885
        %v887 = vpop.xlane.xlu0 %886
        %v888 = vrcp.pop %v887
        %v889 = vmul.f32 %v884, %v888
        %v890 = vpack.c.bf16 %v889, %v889
        %891 = vrot.lane.b32.xlu0 %v597, 48
        %v892 = vpop.permute.xlu0 %891
        %v894 = vsel %vm601, %v890, 0
        %v897 = vsel %vm666, %v892, 0
        %899 = vmatprep.subr.bf16.mxu0 0
        %900 = vmatpush1.bf16.msra.mxu0 0
        %901 = vmatprep.subr.bf16.mxu0 0
        %902 = vmatpush1.bf16.msra.mxu0 0
        %903 = vmatprep.subr.bf16.mxu0 0
        %904 = vmatpush1.bf16.msra.mxu0 0
        %905 = vmatprep.subr.bf16.mxu0 0
        %906 = vmatpush1.bf16.msra.mxu0 0
        %907 = vmatprep.subr.bf16.mxu0 0
        %908 = vmatpush1.bf16.msra.mxu0 0
        %909 = vmatprep.subr.bf16.mxu0 0
        %910 = vmatpush1.bf16.msra.mxu0 0
        %911 = vmatprep.subr.bf16.mxu0 0
        %912 = vmatpush1.bf16.msra.mxu0 0
        %913 = vmatprep.subr.bf16.mxu0 0
        %914 = vmatpush1.bf16.msra.mxu0 %v897
        %915 = vmatprep.subr.bf16.mxu0 0
        %916 = vmatpush2.bf16.msra.mxu0 0
        %917 = vmatprep.subr.bf16.mxu0 0
        %918 = vmatpush2.bf16.msra.mxu0 0
        %919 = vmatprep.subr.bf16.mxu0 0
        %920 = vmatpush2.bf16.msra.mxu0 0
        %921 = vmatprep.subr.bf16.mxu0 0
        %922 = vmatpush2.bf16.msra.mxu0 0
        %923 = vmatprep.subr.bf16.mxu0 0
        %924 = vmatpush2.bf16.msra.mxu0 0
        %925 = vmatprep.subr.bf16.mxu0 0
        %926 = vmatpush2.bf16.msra.mxu0 0
        %927 = vmatprep.subr.bf16.mxu0 0
        %928 = vmatpush2.bf16.msra.mxu0 0
        %929 = vmatprep.subr.bf16.mxu0 0
        %930 = vmatpush2.bf16.msra.mxu0 0
        %931 = vmatprep.mubr.bf16.mxu0 0
        %932 = vmatmul.mubr.bf16.gmra.mxu0 %v894
        %v933 = vpop.f32.mrf.mxu0
        %v934 = vadd.f32 0.0, %v933
        %v935 = vpop.f32.mrf.mxu0
        %v936 = vpop.f32.mrf.mxu0
        %v937 = vpop.f32.mrf.mxu0
        %938 = vdwg.mxu0
        %940 = vrot.lane.b32.xlu0 %v934, 16
        %v941 = vpop.permute.xlu0 %940
        %vm943 = vcmask 195712
        %944 = vst.msk [vmem:[#allocation3] sm:$0xff] %vm943, %v941
        %945 = vrot.lane.b32.xlu0 %v597, 104
        %v946 = vpop.permute.xlu0 %945
        %947 = vrot.lane.b32.xlu0 %v597, 72
        %v948 = vpop.permute.xlu0 %947
        %v950 = vsel %vm601, %v946, 0
        %v953 = vsel %vm601, %v948, 0
        %955 = vmatprep.subr.bf16.mxu0 0
        %956 = vmatpush1.bf16.xpose.msra.mxu0 0
        %957 = vmatprep.subr.bf16.mxu0 0
        %958 = vmatpush1.bf16.xpose.msra.mxu0 0
        %959 = vmatprep.subr.bf16.mxu0 0
        %960 = vmatpush1.bf16.xpose.msra.mxu0 0
        %961 = vmatprep.subr.bf16.mxu0 0
        %962 = vmatpush1.bf16.xpose.msra.mxu0 0
        %963 = vmatprep.subr.bf16.mxu0 0
        %964 = vmatpush1.bf16.xpose.msra.mxu0 0
        %965 = vmatprep.subr.bf16.mxu0 0
        %966 = vmatpush1.bf16.xpose.msra.mxu0 0
        %967 = vmatprep.subr.bf16.mxu0 0
        %968 = vmatpush1.bf16.xpose.msra.mxu0 0
        %969 = vmatprep.subr.bf16.mxu0 0
        %970 = vmatpush1.bf16.xpose.msra.mxu0 %v953
        %971 = vmatprep.subr.bf16.mxu0 0
        %972 = vmatpush2.bf16.xpose.msra.mxu0 0
        %973 = vmatprep.subr.bf16.mxu0 0
        %974 = vmatpush2.bf16.xpose.msra.mxu0 0
        %975 = vmatprep.subr.bf16.mxu0 0
        %976 = vmatpush2.bf16.xpose.msra.mxu0 0
        %977 = vmatprep.subr.bf16.mxu0 0
        %978 = vmatpush2.bf16.xpose.msra.mxu0 0
        %979 = vmatprep.subr.bf16.mxu0 0
        %980 = vmatpush2.bf16.xpose.msra.mxu0 0
        %981 = vmatprep.subr.bf16.mxu0 0
        %982 = vmatpush2.bf16.xpose.msra.mxu0 0
        %983 = vmatprep.subr.bf16.mxu0 0
        %984 = vmatpush2.bf16.xpose.msra.mxu0 0
        %985 = vmatprep.subr.bf16.mxu0 0
        %986 = vmatpush2.bf16.xpose.msra.mxu0 0
        %987 = vmatprep.mubr.bf16.mxu0 0
        %988 = vmatmul.mubr.bf16.gmra.mxu0 %v950
        %v989 = vpop.f32.mrf.mxu0
        %v990 = vadd.f32 0.0, %v989
        %v991 = vpop.f32.mrf.mxu0
        %v992 = vpop.f32.mrf.mxu0
        %v993 = vpop.f32.mrf.mxu0
        %994 = vdwg.mxu0
        %v995 = vmul.f32 %v990, 0.35355338
        %v996 = vsel %vm601, %v995, -inf
        %997 = vmax.xlane.f32.xlu0 %v996
        %v998 = vpop.xlane.xlu0 %997
        %v999 = vsub.f32 %v995, %v998
        %v1000 = vmul.f32 %v999, 1.442695
        %v1001 = vpow.pop %v1000
        %v1002 = vsel %vm601, %v1001, 0.0
        %1003 = vadd.xlane.f32.xlu0 %v1002
        %v1004 = vpop.xlane.xlu0 %1003
        %v1005 = vrcp.pop %v1004
        %v1006 = vmul.f32 %v1001, %v1005
        %v1007 = vpack.c.bf16 %v1006, %v1006
        %1008 = vrot.lane.b32.xlu0 %v597, 40
        %v1009 = vpop.permute.xlu0 %1008
        %v1011 = vsel %vm601, %v1007, 0
        %v1014 = vsel %vm666, %v1009, 0
        %1016 = vmatprep.subr.bf16.mxu0 0
        %1017 = vmatpush1.bf16.msra.mxu0 0
        %1018 = vmatprep.subr.bf16.mxu0 0
        %1019 = vmatpush1.bf16.msra.mxu0 0
        %1020 = vmatprep.subr.bf16.mxu0 0
        %1021 = vmatpush1.bf16.msra.mxu0 0
        %1022 = vmatprep.subr.bf16.mxu0 0
        %1023 = vmatpush1.bf16.msra.mxu0 0
        %1024 = vmatprep.subr.bf16.mxu0 0
        %1025 = vmatpush1.bf16.msra.mxu0 0
        %1026 = vmatprep.subr.bf16.mxu0 0
        %1027 = vmatpush1.bf16.msra.mxu0 0
        %1028 = vmatprep.subr.bf16.mxu0 0
        %1029 = vmatpush1.bf16.msra.mxu0 0
        %1030 = vmatprep.subr.bf16.mxu0 0
        %1031 = vmatpush1.bf16.msra.mxu0 %v1014
        %1032 = vmatprep.subr.bf16.mxu0 0
        %1033 = vmatpush2.bf16.msra.mxu0 0
        %1034 = vmatprep.subr.bf16.mxu0 0
        %1035 = vmatpush2.bf16.msra.mxu0 0
        %1036 = vmatprep.subr.bf16.mxu0 0
        %1037 = vmatpush2.bf16.msra.mxu0 0
        %1038 = vmatprep.subr.bf16.mxu0 0
        %1039 = vmatpush2.bf16.msra.mxu0 0
        %1040 = vmatprep.subr.bf16.mxu0 0
        %1041 = vmatpush2.bf16.msra.mxu0 0
        %1042 = vmatprep.subr.bf16.mxu0 0
        %1043 = vmatpush2.bf16.msra.mxu0 0
        %1044 = vmatprep.subr.bf16.mxu0 0
        %1045 = vmatpush2.bf16.msra.mxu0 0
        %1046 = vmatprep.subr.bf16.mxu0 0
        %1047 = vmatpush2.bf16.msra.mxu0 0
        %1048 = vmatprep.mubr.bf16.mxu0 0
        %1049 = vmatmul.mubr.bf16.gmra.mxu0 %v1011
        %v1050 = vpop.f32.mrf.mxu0
        %v1051 = vadd.f32 0.0, %v1050
        %v1052 = vpop.f32.mrf.mxu0
        %v1053 = vpop.f32.mrf.mxu0
        %v1054 = vpop.f32.mrf.mxu0
        %1055 = vdwg.mxu0
        %1057 = vrot.lane.b32.xlu0 %v1051, 24
        %v1058 = vpop.permute.xlu0 %1057
        %vm1060 = vcmask 261312
        %1061 = vst.msk [vmem:[#allocation3] sm:$0xff] %vm1060, %v1058
        %v1062 = vld [vmem:[#allocation3] sm:$0xff]
        %v1063 = vpack.c.bf16 %v1062, %v1062
        %v1064 = vld [vmem:[%s457] sm:$0xf]
        %v1065 = vld [vmem:[%s457 + $0x4] sm:$0xf]
        %v1066 = vld [vmem:[%s457 + $0x8] sm:$0xf]
        %v1067 = vld [vmem:[%s457 + $0xc] sm:$0xf]
        %v1068 = vld [vmem:[%s461 + $0x4] sm:$0x1]
        %v1069 = vlaneseq
        %v1070 = vshrl.u32 %v1069, 7
        %v1071 = vsub.s32 0, %v1070
        %v1072 = vrot.slane %v1068, %v1071
        %v1077 = vunpack.c.l.b16 %v1064
        %v1078 = vunpack.c.l.b16 %v1065
        %v1079 = vunpack.c.l.b16 %v1066
        %v1080 = vunpack.c.l.b16 %v1067
        %v1081 = vpack.c.b16 %v1078, %v1077
        %v1082 = vpack.c.b16 %v1080, %v1079
        %v1086 = vsel %vm553, %v1063, 0
        %1088 = vmatprep.subr.bf16.mxu0 0
        %1089 = vmatpush1.bf16.msra.mxu0 0
        %1090 = vmatprep.subr.bf16.mxu0 0
        %1091 = vmatpush1.bf16.msra.mxu0 0
        %1092 = vmatprep.subr.bf16.mxu0 0
        %1093 = vmatpush1.bf16.msra.mxu0 0
        %1094 = vmatprep.subr.bf16.mxu0 0
        %1095 = vmatpush1.bf16.msra.mxu0 0
        %1096 = vmatprep.subr.bf16.mxu0 0
        %1097 = vmatpush1.bf16.msra.mxu0 0
        %1098 = vmatprep.subr.bf16.mxu0 0
        %1099 = vmatpush1.bf16.msra.mxu0 0
        %1100 = vmatprep.subr.bf16.mxu0 0
        %1101 = vmatpush1.bf16.msra.mxu0 %v1082
        %1102 = vmatprep.subr.bf16.mxu0 0
        %1103 = vmatpush1.bf16.msra.mxu0 %v1081
        %1104 = vmatprep.subr.bf16.mxu0 0
        %1105 = vmatpush2.bf16.msra.mxu0 0
        %1106 = vmatprep.subr.bf16.mxu0 0
        %1107 = vmatpush2.bf16.msra.mxu0 0
        %1108 = vmatprep.subr.bf16.mxu0 0
        %1109 = vmatpush2.bf16.msra.mxu0 0
        %1110 = vmatprep.subr.bf16.mxu0 0
        %1111 = vmatpush2.bf16.msra.mxu0 0
        %1112 = vmatprep.subr.bf16.mxu0 0
        %1113 = vmatpush2.bf16.msra.mxu0 0
        %1114 = vmatprep.subr.bf16.mxu0 0
        %1115 = vmatpush2.bf16.msra.mxu0 0
        %1116 = vmatprep.subr.bf16.mxu0 0
        %1117 = vmatpush2.bf16.msra.mxu0 0
        %1118 = vmatprep.subr.bf16.mxu0 0
        %1119 = vmatpush2.bf16.msra.mxu0 0
        %1120 = vmatprep.mubr.bf16.mxu0 0
        %1121 = vmatmul.mubr.bf16.gmra.mxu0 %v1086
        %v1122 = vpop.f32.mrf.mxu0
        %v1123 = vadd.f32 %v1072, %v1122
        %v1124 = vpop.f32.mrf.mxu0
        %v1125 = vpop.f32.mrf.mxu0
        %v1126 = vpop.f32.mrf.mxu0
        %1127 = vdwg.mxu0
        %v1128 = vadd.f32 %v528, %v1123
        %v1129 = vld [vmem:[%s461] sm:$0x1]
        %v1130 = vld [vmem:[%s461 + $0x1] sm:$0x1]
        %v1131 = vsel %vm553, %v1128, 0.0
        %1132 = vadd.xlane.f32.xlu0 %v1131
        %v1133 = vpop.xlane.xlu0 %1132
        %v1134 = vrcp.pop 32.0
        %v1135 = vmul.f32 %v1133, %v1134
        %v1136 = vsub.f32 %v1128, %v1135
        %v1137 = vmul.f32 %v1136, %v1136
        %v1138 = vsel %vm553, %v1137, 0.0
        %1139 = vadd.xlane.f32.xlu0 %v1138
        %v1140 = vpop.xlane.xlu0 %1139
        %v1141 = vmul.f32 %v1140, %v1134
        %v1142 = vadd.f32 %v1141, 1e-05
        %v1143 = vrsqrt.pop %v1142
        %v1144 = vmul.f32 %v1136, %v1143
        %v1145 = vlaneseq
        %v1146 = vshrl.u32 %v1145, 7
        %v1147 = vsub.s32 0, %v1146
        %v1148 = vrot.slane %v1129, %v1147
        %v1149 = vmul.f32 %v1144, %v1148
        %v1150 = vlaneseq
        %v1151 = vshrl.u32 %v1150, 7
        %v1152 = vsub.s32 0, %v1151
        %v1153 = vrot.slane %v1130, %v1152
        %v1154 = vadd.f32 %v1149, %v1153
        %v1155 = vpack.c.bf16 %v1154, %v1154
        %v1156 = vld [vmem:[%s466] sm:$0xf]
        %v1157 = vld [vmem:[%s466 + $0x4] sm:$0xf]
        %v1158 = vld [vmem:[%s466 + $0x8] sm:$0xf]
        %v1159 = vld [vmem:[%s466 + $0xc] sm:$0xf]
        %v1160 = vld [vmem:[%s469] sm:$0x1]
        %v1162 = vlaneseq
        %v1163 = vshrl.u32 %v1162, 7
        %v1164 = vsub.s32 0, %v1163
        %v1165 = vrot.slane %v1160, %v1164
        %v1171 = vunpack.c.l.b16 %v1156
        %v1172 = vunpack.c.l.b16 %v1157
        %v1173 = vunpack.c.l.b16 %v1158
        %v1174 = vunpack.c.l.b16 %v1159
        %v1175 = vpack.c.b16 %v1172, %v1171
        %v1176 = vpack.c.b16 %v1174, %v1173
        %v1180 = vsel %vm553, %v1155, 0
        %1182 = vmatprep.subr.bf16.mxu0 0
        %1183 = vmatpush1.bf16.msra.mxu0 0
        %1184 = vmatprep.subr.bf16.mxu0 0
        %1185 = vmatpush1.bf16.msra.mxu0 0
        %1186 = vmatprep.subr.bf16.mxu0 0
        %1187 = vmatpush1.bf16.msra.mxu0 0
        %1188 = vmatprep.subr.bf16.mxu0 0
        %1189 = vmatpush1.bf16.msra.mxu0 0
        %1190 = vmatprep.subr.bf16.mxu0 0
        %1191 = vmatpush1.bf16.msra.mxu0 0
        %1192 = vmatprep.subr.bf16.mxu0 0
        %1193 = vmatpush1.bf16.msra.mxu0 0
        %1194 = vmatprep.subr.bf16.mxu0 0
        %1195 = vmatpush1.bf16.msra.mxu0 %v1176
        %1196 = vmatprep.subr.bf16.mxu0 0
        %1197 = vmatpush1.bf16.msra.mxu0 %v1175
        %1198 = vmatprep.subr.bf16.mxu0 0
        %1199 = vmatpush2.bf16.msra.mxu0 0
        %1200 = vmatprep.subr.bf16.mxu0 0
        %1201 = vmatpush2.bf16.msra.mxu0 0
        %1202 = vmatprep.subr.bf16.mxu0 0
        %1203 = vmatpush2.bf16.msra.mxu0 0
        %1204 = vmatprep.subr.bf16.mxu0 0
        %1205 = vmatpush2.bf16.msra.mxu0 0
        %1206 = vmatprep.subr.bf16.mxu0 0
        %1207 = vmatpush2.bf16.msra.mxu0 0
        %1208 = vmatprep.subr.bf16.mxu0 0
        %1209 = vmatpush2.bf16.msra.mxu0 0
        %1210 = vmatprep.subr.bf16.mxu0 0
        %1211 = vmatpush2.bf16.msra.mxu0 0
        %1212 = vmatprep.subr.bf16.mxu0 0
        %1213 = vmatpush2.bf16.msra.mxu0 0
        %1214 = vmatprep.mubr.bf16.mxu0 0
        %1215 = vmatmul.mubr.bf16.gmra.mxu0 %v1180
        %v1216 = vpop.f32.mrf.mxu0
        %v1217 = vadd.f32 %v1165, %v1216
        %v1218 = vpop.f32.mrf.mxu0
        %v1219 = vpop.f32.mrf.mxu0
        %v1220 = vpop.f32.mrf.mxu0
        %1221 = vdwg.mxu0
        %v1222 = vmul.f32 %v1217, %v1217
        %v1223 = vmul.f32 %v1217, %v1222
        %v1224 = vmul.f32 %v1223, 0.044715
        %v1225 = vadd.f32 %v1217, %v1224
        %v1226 = vmul.f32 %v1225, 0.7978846
        %v1227 = vtanh.pop %v1226
        %v1228 = vadd.f32 %v1227, 1.0
        %v1229 = vmul.f32 %v1228, 0.5
        %v1230 = vmul.f32 %v1217, %v1229
        %v1231 = vpack.c.bf16 %v1230, %v1230
        %v1232 = vld [vmem:[%s474] sm:$0xf]
        %v1233 = vld [vmem:[%s474 + $0x4] sm:$0xf]
        %v1234 = vld [vmem:[%s474 + $0x8] sm:$0xf]
        %v1235 = vld [vmem:[%s474 + $0xc] sm:$0xf]
        %v1236 = vld [vmem:[%s474 + $0x10] sm:$0xf]
        %v1237 = vld [vmem:[%s474 + $0x14] sm:$0xf]
        %v1238 = vld [vmem:[%s474 + $0x18] sm:$0xf]
        %v1239 = vld [vmem:[%s474 + $0x1c] sm:$0xf]
        %v1240 = vld [vmem:[%s474 + $0x20] sm:$0xf]
        %v1241 = vld [vmem:[%s474 + $0x24] sm:$0xf]
        %v1242 = vld [vmem:[%s474 + $0x28] sm:$0xf]
        %v1243 = vld [vmem:[%s474 + $0x2c] sm:$0xf]
        %v1244 = vld [vmem:[%s474 + $0x30] sm:$0xf]
        %v1245 = vld [vmem:[%s474 + $0x34] sm:$0xf]
        %v1246 = vld [vmem:[%s474 + $0x38] sm:$0xf]
        %v1247 = vld [vmem:[%s474 + $0x3c] sm:$0xf]
        %v1248 = vld [vmem:[%s461 + $0x5] sm:$0x1]
        %v1249 = vlaneseq
        %v1250 = vshrl.u32 %v1249, 7
        %v1251 = vsub.s32 0, %v1250
        %v1252 = vrot.slane %v1248, %v1251
        %v1269 = vunpack.c.l.b16 %v1232
        %v1270 = vunpack.c.l.b16 %v1233
        %v1271 = vunpack.c.l.b16 %v1234
        %v1272 = vunpack.c.l.b16 %v1235
        %v1273 = vunpack.c.l.b16 %v1236
        %v1274 = vunpack.c.l.b16 %v1237
        %v1275 = vunpack.c.l.b16 %v1238
        %v1276 = vunpack.c.l.b16 %v1239
        %v1277 = vunpack.c.l.b16 %v1240
        %v1278 = vunpack.c.l.b16 %v1241
        %v1279 = vunpack.c.l.b16 %v1242
        %v1280 = vunpack.c.l.b16 %v1243
        %v1281 = vunpack.c.l.b16 %v1244
        %v1282 = vunpack.c.l.b16 %v1245
        %v1283 = vunpack.c.l.b16 %v1246
        %v1284 = vunpack.c.l.b16 %v1247
        %v1285 = vpack.c.b16 %v1270, %v1269
        %v1286 = vpack.c.b16 %v1272, %v1271
        %v1287 = vpack.c.b16 %v1274, %v1273
        %v1288 = vpack.c.b16 %v1276, %v1275
        %v1289 = vpack.c.b16 %v1278, %v1277
        %v1290 = vpack.c.b16 %v1280, %v1279
        %v1291 = vpack.c.b16 %v1282, %v1281
        %v1292 = vpack.c.b16 %v1284, %v1283
        %1301 = vmatprep.subr.bf16.mxu0 0
        %1302 = vmatpush1.bf16.msra.mxu0 %v1292
        %1303 = vmatprep.subr.bf16.mxu0 0
        %1304 = vmatpush1.bf16.msra.mxu0 %v1291
        %1305 = vmatprep.subr.bf16.mxu0 0
        %1306 = vmatpush1.bf16.msra.mxu0 %v1290
        %1307 = vmatprep.subr.bf16.mxu0 0
        %1308 = vmatpush1.bf16.msra.mxu0 %v1289
        %1309 = vmatprep.subr.bf16.mxu0 0
        %1310 = vmatpush1.bf16.msra.mxu0 %v1288
        %1311 = vmatprep.subr.bf16.mxu0 0
        %1312 = vmatpush1.bf16.msra.mxu0 %v1287
        %1313 = vmatprep.subr.bf16.mxu0 0
        %1314 = vmatpush1.bf16.msra.mxu0 %v1286
        %1315 = vmatprep.subr.bf16.mxu0 0
        %1316 = vmatpush1.bf16.msra.mxu0 %v1285
        %1317 = vmatprep.subr.bf16.mxu0 0
        %1318 = vmatpush2.bf16.msra.mxu0 0
        %1319 = vmatprep.subr.bf16.mxu0 0
        %1320 = vmatpush2.bf16.msra.mxu0 0
        %1321 = vmatprep.subr.bf16.mxu0 0
        %1322 = vmatpush2.bf16.msra.mxu0 0
        %1323 = vmatprep.subr.bf16.mxu0 0
        %1324 = vmatpush2.bf16.msra.mxu0 0
        %1325 = vmatprep.subr.bf16.mxu0 0
        %1326 = vmatpush2.bf16.msra.mxu0 0
        %1327 = vmatprep.subr.bf16.mxu0 0
        %1328 = vmatpush2.bf16.msra.mxu0 0
        %1329 = vmatprep.subr.bf16.mxu0 0
        %1330 = vmatpush2.bf16.msra.mxu0 0
        %1331 = vmatprep.subr.bf16.mxu0 0
        %1332 = vmatpush2.bf16.msra.mxu0 0
        %1333 = vmatprep.mubr.bf16.mxu0 0
        %1334 = vmatmul.mubr.bf16.gmra.mxu0 %v1231
        %v1335 = vpop.f32.mrf.mxu0
        %v1336 = vadd.f32 %v1252, %v1335
        %v1337 = vpop.f32.mrf.mxu0
        %v1338 = vpop.f32.mrf.mxu0
        %v1339 = vpop.f32.mrf.mxu0
        %1340 = vdwg.mxu0
        %v1341 = vadd.f32 %v1154, %v1336
        %v1342 = vld [vmem:[%s461 + $0x2] sm:$0x1]
        %v1343 = vld [vmem:[%s461 + $0x3] sm:$0x1]
        %v1344 = vsel %vm553, %v1341, 0.0
        %1345 = vadd.xlane.f32.xlu0 %v1344
        %v1346 = vpop.xlane.xlu0 %1345
        %v1347 = vmul.f32 %v1346, %v1134
        %v1348 = vsub.f32 %v1341, %v1347
        %v1349 = vmul.f32 %v1348, %v1348
        %v1350 = vsel %vm553, %v1349, 0.0
        %1351 = vadd.xlane.f32.xlu0 %v1350
        %v1352 = vpop.xlane.xlu0 %1351
        %v1353 = vmul.f32 %v1352, %v1134
        %v1354 = vadd.f32 %v1353, 1e-05
        %v1355 = vrsqrt.pop %v1354
        %v1356 = vmul.f32 %v1348, %v1355
        %v1357 = vlaneseq
        %v1358 = vshrl.u32 %v1357, 7
        %v1359 = vsub.s32 0, %v1358
        %v1360 = vrot.slane %v1342, %v1359
        %v1361 = vmul.f32 %v1356, %v1360
        %v1362 = vlaneseq
        %v1363 = vshrl.u32 %v1362, 7
        %v1364 = vsub.s32 0, %v1363
        %v1365 = vrot.slane %v1343, %v1364
        %v1366 = vadd.f32 %v1361, %v1365
        %1367 = vst.msk [vmem:[#allocation2] sm:$0xff] %vm553, %v1366
        %p1368 = scmp.eq.s32.totalorder %s30, 1
        // Predicated region
        $region99: #{tpu_custom_call.1} parent=59 // pred_check
          %p1369 = pneg %p1368
        $region100: #{tpu_custom_call.1} parent=59 // pred_check_branch
          %1371 = sbr.rel (%p1369) target = $region102
        $region101: #{tpu_custom_call.1} parent=59 // pred_region
          %v1372 = vld [vmem:[%s8] sm:$0x1]
          %v1373 = vld [vmem:[%s8 + $0x1] sm:$0x1]
          %vm1374 = vcmask 253952
          %v1375 = vsel %vm1374, %v1366, 0.0
          %1376 = vadd.xlane.f32.xlu0 %v1375
          %v1377 = vpop.xlane.xlu0 %1376
          %v1378 = vmul.f32 %v1377, %v1134
          %v1379 = vsub.f32 %v1366, %v1378
          %v1380 = vmul.f32 %v1379, %v1379
          %v1381 = vsel %vm1374, %v1380, 0.0
          %1382 = vadd.xlane.f32.xlu0 %v1381
          %v1383 = vpop.xlane.xlu0 %1382
          %v1384 = vmul.f32 %v1383, %v1134
          %v1385 = vadd.f32 %v1384, 1e-05
          %v1386 = vrsqrt.pop %v1385
          %v1387 = vmul.f32 %v1379, %v1386
          %v1388 = vmul.f32 %v1387, %v1372
          %v1389 = vadd.f32 %v1388, %v1373
          %v1390 = vpack.c.bf16 %v1389, %v1389
          %v1391 = vld [vmem:[%s9] sm:$0xf]
          %v1392 = vld [vmem:[%s9 + $0x4] sm:$0xf]
          %v1393 = vld [vmem:[%s9 + $0x8] sm:$0xf]
          %v1394 = vld [vmem:[%s9 + $0xc] sm:$0xf]
          %v1395 = vld [vmem:[%s10] sm:$0x1]
          %v1400 = vunpack.c.l.b16 %v1391
          %v1401 = vunpack.c.l.b16 %v1392
          %v1402 = vunpack.c.l.b16 %v1393
          %v1403 = vunpack.c.l.b16 %v1394
          %v1404 = vpack.c.b16 %v1401, %v1400
          %v1405 = vpack.c.b16 %v1403, %v1402
          %v1409 = vsel %vm553, %v1390, 0
          %1411 = vmatprep.subr.bf16.mxu0 0
          %1412 = vmatpush1.bf16.msra.mxu0 0
          %1413 = vmatprep.subr.bf16.mxu0 0
          %1414 = vmatpush1.bf16.msra.mxu0 0
          %1415 = vmatprep.subr.bf16.mxu0 0
          %1416 = vmatpush1.bf16.msra.mxu0 0
          %1417 = vmatprep.subr.bf16.mxu0 0
          %1418 = vmatpush1.bf16.msra.mxu0 0
          %1419 = vmatprep.subr.bf16.mxu0 0
          %1420 = vmatpush1.bf16.msra.mxu0 0
          %1421 = vmatprep.subr.bf16.mxu0 0
          %1422 = vmatpush1.bf16.msra.mxu0 0
          %1423 = vmatprep.subr.bf16.mxu0 0
          %1424 = vmatpush1.bf16.msra.mxu0 %v1405
          %1425 = vmatprep.subr.bf16.mxu0 0
          %1426 = vmatpush1.bf16.msra.mxu0 %v1404
          %1427 = vmatprep.subr.bf16.mxu0 0
          %1428 = vmatpush2.bf16.msra.mxu0 0
          %1429 = vmatprep.subr.bf16.mxu0 0
          %1430 = vmatpush2.bf16.msra.mxu0 0
          %1431 = vmatprep.subr.bf16.mxu0 0
          %1432 = vmatpush2.bf16.msra.mxu0 0
          %1433 = vmatprep.subr.bf16.mxu0 0
          %1434 = vmatpush2.bf16.msra.mxu0 0
          %1435 = vmatprep.subr.bf16.mxu0 0
          %1436 = vmatpush2.bf16.msra.mxu0 0
          %1437 = vmatprep.subr.bf16.mxu0 0
          %1438 = vmatpush2.bf16.msra.mxu0 0
          %1439 = vmatprep.subr.bf16.mxu0 0
          %1440 = vmatpush2.bf16.msra.mxu0 0
          %1441 = vmatprep.subr.bf16.mxu0 0
          %1442 = vmatpush2.bf16.msra.mxu0 0
          %1443 = vmatprep.mubr.bf16.mxu0 0
          %1444 = vmatmul.mubr.bf16.gmra.mxu0 %v1409
          %v1445 = vpop.f32.mrf.mxu0
          %v1446 = vadd.f32 %v1395, %v1445
          %v1447 = vpop.f32.mrf.mxu0
          %v1448 = vpop.f32.mrf.mxu0
          %v1449 = vpop.f32.mrf.mxu0
          %1450 = vdwg.mxu0
          %1451 = vst [vmem:[%s444] sm:$0x1] %v1446
        $region102: #{tpu_custom_call.1} parent=59 // pred_fallthru
          _
        %s1452 = sand.u32 %s290, 1
        %s1453 = scalar_lea.sflag [#allocation6], %s1452
        %s1454 = sand.u32 %s290, 1
        %s1455 = scalar_lea.vmem [#allocation5], %s1454
        // Predicated region
        $region103: #{tpu_custom_call.1} parent=59 // pred_check
          %p1456 = pneg %p300
        $region104: #{tpu_custom_call.1} parent=59 // pred_check_branch
          %1458 = sbr.rel (%p1456) target = $region106
        $region105: #{tpu_custom_call.1} parent=59 // pred_region
          %s1460 = ssub.s32 16, 16
          %1461 = vsyncadd %s1453, %s1460
          %s1462 = smul.addr %s29, 16
          %s1463 = scalar_lea.hbm %s11, %s1462
          %s1465 = sshll.u32 %s1455, 4
          %s1466 = int_to_ptr.vmem [resolvable:$true] %s1465
          %1468 = dma.vmem_to_hbm [thread:$0]  %s1466, 16, %s1463, %s1453
        $region106: #{tpu_custom_call.1} parent=59 // pred_fallthru
          _
      $region60: #{tpu_custom_call.1} parent=5 // pred_fallthru
        _
      %p1469 = scmp.le.s32.totalorder 2, %s20
      // Predicated region
      $region107: #{tpu_custom_call.1} parent=5 // pred_check
        %p1470 = pneg %p1469
      $region108: #{tpu_custom_call.1} parent=5 // pred_check_branch
        %1472 = sbr.rel (%p1470) target = $region110
      $region109: #{tpu_custom_call.1} parent=5 // pred_region
        %s1473 = ssub.s32 %s20, 2
        // Predicated region
        $region111: #{tpu_custom_call.1} parent=109 // pred_check
          %p1474 = pneg %p306
        $region112: #{tpu_custom_call.1} parent=109 // pred_check_branch
          %1476 = sbr.rel (%p1474) target = $region114
        $region113: #{tpu_custom_call.1} parent=109 // pred_region
          %s1477 = sand.u32 %s291, 1
          %s1478 = scalar_lea.sflag [#allocation6], %s1477
          %s1479 = sand.u32 %s291, 1
          %s1480 = scalar_lea.vmem [#allocation5], %s1479
          %1481 = dma.done %s1478, 16
        $region114: #{tpu_custom_call.1} parent=109 // pred_fallthru
          _
      $region110: #{tpu_custom_call.1} parent=5 // pred_fallthru
        _
    $region6: #{tpu_custom_call.1} parent=1 // loop_footer
      %s24 = sadd.s32 1, %s20
    $region7: #{tpu_custom_call.1} parent=1 // loop_footer_branch
      %19 = sbr.rel target = $region3
    $region8: #{tpu_custom_call.1} parent=1 // loop_exit
      _
    %1482 = vsyncpa [#allocation6], 1
    %s1483 = scalar_lea.sflag [#allocation6], 1
    %1484 = vsyncpa %s1483, 1
  %1485 = vsyncmov [#allocation4]
  %s1486 = vpop.sfrf %1485
  %p1487 = scmp.eq.s32.totalorder %s1486, 0
  %p1488 = pneg %p1487
  %1490 = shalt.err (%p1488)

</llo_original>
